<compile_context>
chip_gen: v5e
topology: v5e:2x2
jax: 0.10.0
libtpu: 0.0.40
codegen_flags: <defaults>
</compile_context>

<pallas_src>
import math
from functools import partial

import jax
import jax.numpy as jnp
import numpy as np
from jax.experimental import pallas as pl
from jax.experimental.pallas import tpu as pltpu

NBINS = 32                    # torch.linspace(-1, 1, 32)
SIGMA = 0.01                  # torch.tensor(0.01)
# PyTorch uses eps = 1e-40, which is subnormal in f32 and flushed to zero on
# TPU (-> log(0) = -inf -> NaN).  1e-30 is a normal-range guard whose
# contribution to the entropy is far below f32 resolution.
EPS = 1e-30

_SCALE = 1.0 / (SIGMA * math.sqrt(2.0))                   # folds 1/sigma and -0.5
_BINS_SCALED = tuple(float(b) * _SCALE
                     for b in np.linspace(-1.0, 1.0, NBINS, dtype=np.float64))


def _entropy_kernel(x_ref, out_ref, pdf_ref, *, compute_dtype):
    """x_ref: [PP, T] (pixels on sublanes, patches on lanes).
    out_ref: [1, T].  pdf_ref: [NBINS, T] f32 VMEM scratch."""
    pp = x_ref.shape[0]
    xs = x_ref[...] * jnp.float32(_SCALE)     # one full-slab scale per tile (f32)

    is_bf16 = np.dtype(compute_dtype) == np.dtype(jnp.bfloat16)
    chunk = 16 if is_bf16 else 8              # sublane-tile height of compute dtype

    # ---- main loop: one [PP, T] slab live at a time, pdf packed per bin ----
    for b in range(NBINS):
        # Bin subtract stays in f32 (accurate distance); square/negate/exp run
        # in compute_dtype (bf16 on v6e/v7x -> ~2x EUP throughput).
        d = (xs - jnp.float32(_BINS_SCALED[b])).astype(compute_dtype)
        kern = jnp.exp(-(d * d))                                    # EUP
        if pp > chunk and pp % chunk == 0:
            # VALU pre-reduction of sublane tiles; single XLU reduce below.
            acc = kern[0:chunk, :]
            for c in range(1, pp // chunk):
                acc = acc + kern[c * chunk:(c + 1) * chunk, :]
        else:
            acc = kern
        row = jnp.sum(acc.astype(jnp.float32), axis=0, keepdims=True)  # f32 accum
        pdf_ref[pl.ds(b, 1), :] = row                               # [1, T] store

    # ---- vectorized epilogue on the packed [NBINS, T] slab ----
    pdf = pdf_ref[...]                                              # [NBINS, T]
    norm = jnp.sum(pdf, axis=0, keepdims=True)                      # [1, T]
    inv_norm = pl.reciprocal(norm + jnp.float32(EPS))               # approx=False
    p = pdf * inv_norm + jnp.float32(EPS)                           # [NBINS, T]
    ent = jnp.sum(p * jnp.log(p), axis=0, keepdims=True)            # full-sublane log
    out_ref[...] = -ent                                             # lane-dense [1, T]


def _round_up(x: int, m: int) -> int:
    return ((x + m - 1) // m) * m


def _default_compute_dtype():
    """bf16 hot chain on v6e / v7x (bf16 VPU+EUP); f32 elsewhere (v5e etc.)."""
    try:
        kind = jax.devices()[0].device_kind.lower()
    except Exception:
        return jnp.float32
    if any(tag in kind for tag in ("v6", "v7", "tpu7")):
        return jnp.bfloat16
    return jnp.float32


def entropy_forward(inputs, patch_size, *, max_lane_tile=1024, compute_dtype=None):
    """Pallas implementation of Entropy.forward. inputs: [B, 3, H, W] (NCHW)."""
    if compute_dtype is None:
        compute_dtype = _default_compute_dtype()

    B, C, H, W = inputs.shape
    assert C == 3, "grayscale conversion expects 3 channels"
    P = patch_size
    assert H % P == 0 and W % P == 0
    hh, ww = H // P, W // P
    BN = B * hh * ww
    PP = P * P

    # ---- glue: grayscale in f32 + unfold, transposed to [PP, BN] ----
    # TODO(synk): this pre-pass (gray combine + patch transpose) is one extra
    # HBM round trip; the per-lane patch gather is not a rectangular BlockSpec
    # slice so it stays in the XLA wrapper.  Profile / allow_input_fusion later.
    x = inputs.astype(jnp.float32)
    gray = 0.2989 * x[:, 0] + 0.587 * x[:, 1] + 0.114 * x[:, 2]       # [B, H, W]
    patches = gray.reshape(B, hh, P, ww, P)
    # -> [P, P, B, hh, ww] -> [PP, BN]: pixels on sublanes, patches on lanes.
    patches_t = patches.transpose(2, 4, 0, 1, 3).reshape(PP, BN)

    # Lane tile: largest multiple of 128 up to max_lane_tile; keep the grid at
    # >= 2 steps when possible so v7x's two TensorCores both get work.
    max_lane_tile = max(128, (max_lane_tile // 128) * 128)
    bn128 = _round_up(BN, 128)
    T = min(max_lane_tile, bn128)
    if bn128 // T < 2 and T >= 256:
        T = _round_up(bn128 // 2, 128)
    BN_pad = _round_up(BN, T)
    if BN_pad != BN:
        patches_t = jnp.pad(patches_t, ((0, 0), (0, BN_pad - BN)))

    out = pl.pallas_call(
        partial(_entropy_kernel, compute_dtype=compute_dtype),
        out_shape=jax.ShapeDtypeStruct((1, BN_pad), jnp.float32),
        grid=(BN_pad // T,),
        in_specs=[pl.BlockSpec((PP, T), lambda i: (0, i))],
        out_specs=pl.BlockSpec((1, T), lambda i: (0, i)),
        scratch_shapes=[pltpu.VMEM((NBINS, T), jnp.float32)],
        compiler_params=pltpu.CompilerParams(
            dimension_semantics=("parallel",)),
    )(patches_t)

    # rearrange '(B H W) -> B H W'
    return out[0, :BN].reshape(B, hh, ww)


def entropy_reference(inputs, patch_size):
    """Pure-JAX reference mirroring the PyTorch module (TPU-safe eps)."""
    B, C, H, W = inputs.shape
    P = patch_size
    hh, ww = H // P, W // P
    x = inputs.astype(jnp.float32)
    gray = 0.2989 * x[:, 0] + 0.587 * x[:, 1] + 0.114 * x[:, 2]
    patches = gray.reshape(B, hh, P, ww, P).transpose(0, 1, 3, 2, 4)
    patches = patches.reshape(B * hh * ww, P * P)
    bins = jnp.linspace(-1.0, 1.0, NBINS, dtype=jnp.float32)
    res = patches[:, None, :] - bins[None, :, None]
    kv = jnp.exp(-0.5 * (res / SIGMA) ** 2)
    pdf = jnp.mean(kv, axis=2)
    norm = jnp.sum(pdf, axis=1, keepdims=True) + EPS
    pdf = pdf / norm + EPS
    ent = -jnp.sum(pdf * jnp.log(pdf), axis=1)
    return ent.reshape(B, hh, ww)


if __name__ == "__main__":
    key = jax.random.PRNGKey(0)

    configs = [
        # (B, H, W, patch_size)
        (2, 16, 16, 4),      # BN = 32   -> single padded 128-lane tile
        (2, 128, 128, 4),    # BN = 2048 -> two 1024-lane tiles (multi-step grid)
    ]
    default_dtype = _default_compute_dtype()
    for (B, H, W, P) in configs:
        key, sub = jax.random.split(key)
        x = jax.random.uniform(sub, (B, 3, H, W), minval=-1.0, maxval=1.0,
                               dtype=jnp.float32)
        ref = entropy_reference(x, P)

        # Exact (f32) path: tight tolerance against the reference.
        out_f32 = jax.block_until_ready(
            entropy_forward(x, P, compute_dtype=jnp.float32))
        assert out_f32.shape == (B, H // P, W // P)
        np.testing.assert_allclose(np.asarray(out_f32), np.asarray(ref),
                                   rtol=1e-4, atol=1e-4)

        # Default path (bf16 hot chain on v6e/v7x): approximate fast path, so
        # a loose tolerance; on v5e this is the same f32 path, checked tight.
        out = jax.block_until_ready(entropy_forward(x, P))
        assert out.shape == (B, H // P, W // P)
        if np.dtype(default_dtype) == np.dtype(jnp.bfloat16):
            np.testing.assert_allclose(np.asarray(out), np.asarray(ref),
                                       rtol=1e-1, atol=1e-1)
        else:
            np.testing.assert_allclose(np.asarray(out), np.asarray(ref),
                                       rtol=1e-4, atol=1e-4)

    print("KERNEL_OK")
</pallas_src>

<mosaic_0001>
module attributes {stable_mosaic.version = 11 : i64} {
  func.func @_entropy_kernel(%arg0: i32, %arg1: memref<16x128xf32, #tpu.memory_space<vmem>>, %arg2: memref<1x128xf32, #tpu.memory_space<vmem>>, %arg3: memref<32x128xf32, #tpu.memory_space<vmem>>) attributes {dimension_semantics = [#tpu.dimension_semantics<parallel>], iteration_bounds = array<i64: 1>, scalar_prefetch = 0 : i64, scratch_operands = 1 : i64, tpu.core_type = #tpu.core_type<tc>, window_params = [{transform_indices = @transform_0, window_bounds = array<i64: 16, 128>}, {transform_indices = @transform_1, window_bounds = array<i64: 1, 128>}]} {
    %c0 = arith.constant 0 : index
    %c0_0 = arith.constant 0 : index
    %0 = vector.load %arg1[%c0, %c0_0] : memref<16x128xf32, #tpu.memory_space<vmem>>, vector<16x128xf32>
    %cst = arith.constant 70.7106781 : f32
    %1 = vector.broadcast %cst : f32 to vector<16x128xf32>
    %2 = arith.mulf %0, %1 : vector<16x128xf32>
    %cst_1 = arith.constant -70.7106781 : f32
    %3 = vector.broadcast %cst_1 : f32 to vector<16x128xf32>
    %4 = arith.subf %2, %3 : vector<16x128xf32>
    %5 = arith.mulf %4, %4 : vector<16x128xf32>
    %cst_2 = arith.constant 0.000000e+00 : f32
    %6 = vector.broadcast %cst_2 : f32 to vector<16x128xf32>
    %7 = arith.subf %6, %5 : vector<16x128xf32>
    %8 = math.exp %7 : vector<16x128xf32>
    %9 = vector.extract_strided_slice %8 {offsets = [0, 0], sizes = [8, 128], strides = [1, 1]} : vector<16x128xf32> to vector<8x128xf32>
    %10 = vector.extract_strided_slice %8 {offsets = [8, 0], sizes = [8, 128], strides = [1, 1]} : vector<16x128xf32> to vector<8x128xf32>
    %11 = arith.addf %9, %10 : vector<8x128xf32>
    %cst_3 = arith.constant dense<0.000000e+00> : vector<128xf32>
    %12 = vector.multi_reduction <add>, %11, %cst_3 [0] : vector<8x128xf32> to vector<128xf32>
    %13 = vector.shape_cast %12 : vector<128xf32> to vector<1x128xf32>
    %c0_4 = arith.constant 0 : index
    %c0_5 = arith.constant 0 : index
    %14 = vector.load %arg3[%c0_4, %c0_5] : memref<32x128xf32, #tpu.memory_space<vmem>>, vector<1x128xf32>
    tpu.vector_store %arg3[%c0_4, %c0_5], %13 {strides = array<i32>} : memref<32x128xf32, #tpu.memory_space<vmem>>, vector<1x128xf32>,
    %cst_6 = arith.constant -66.1486968 : f32
    %15 = vector.broadcast %cst_6 : f32 to vector<16x128xf32>
    %16 = arith.subf %2, %15 : vector<16x128xf32>
    %17 = arith.mulf %16, %16 : vector<16x128xf32>
    %cst_7 = arith.constant 0.000000e+00 : f32
    %18 = vector.broadcast %cst_7 : f32 to vector<16x128xf32>
    %19 = arith.subf %18, %17 : vector<16x128xf32>
    %20 = math.exp %19 : vector<16x128xf32>
    %21 = vector.extract_strided_slice %20 {offsets = [0, 0], sizes = [8, 128], strides = [1, 1]} : vector<16x128xf32> to vector<8x128xf32>
    %22 = vector.extract_strided_slice %20 {offsets = [8, 0], sizes = [8, 128], strides = [1, 1]} : vector<16x128xf32> to vector<8x128xf32>
    %23 = arith.addf %21, %22 : vector<8x128xf32>
    %cst_8 = arith.constant dense<0.000000e+00> : vector<128xf32>
    %24 = vector.multi_reduction <add>, %23, %cst_8 [0] : vector<8x128xf32> to vector<128xf32>
    %25 = vector.shape_cast %24 : vector<128xf32> to vector<1x128xf32>
    %c1 = arith.constant 1 : index
    %c0_9 = arith.constant 0 : index
    %26 = vector.load %arg3[%c1, %c0_9] : memref<32x128xf32, #tpu.memory_space<vmem>>, vector<1x128xf32>
    tpu.vector_store %arg3[%c1, %c0_9], %25 {strides = array<i32>} : memref<32x128xf32, #tpu.memory_space<vmem>>, vector<1x128xf32>,
    %cst_10 = arith.constant -61.5867195 : f32
    %27 = vector.broadcast %cst_10 : f32 to vector<16x128xf32>
    %28 = arith.subf %2, %27 : vector<16x128xf32>
    %29 = arith.mulf %28, %28 : vector<16x128xf32>
    %cst_11 = arith.constant 0.000000e+00 : f32
    %30 = vector.broadcast %cst_11 : f32 to vector<16x128xf32>
    %31 = arith.subf %30, %29 : vector<16x128xf32>
    %32 = math.exp %31 : vector<16x128xf32>
    %33 = vector.extract_strided_slice %32 {offsets = [0, 0], sizes = [8, 128], strides = [1, 1]} : vector<16x128xf32> to vector<8x128xf32>
    %34 = vector.extract_strided_slice %32 {offsets = [8, 0], sizes = [8, 128], strides = [1, 1]} : vector<16x128xf32> to vector<8x128xf32>
    %35 = arith.addf %33, %34 : vector<8x128xf32>
    %cst_12 = arith.constant dense<0.000000e+00> : vector<128xf32>
    %36 = vector.multi_reduction <add>, %35, %cst_12 [0] : vector<8x128xf32> to vector<128xf32>
    %37 = vector.shape_cast %36 : vector<128xf32> to vector<1x128xf32>
    %c2 = arith.constant 2 : index
    %c0_13 = arith.constant 0 : index
    %38 = vector.load %arg3[%c2, %c0_13] : memref<32x128xf32, #tpu.memory_space<vmem>>, vector<1x128xf32>
    tpu.vector_store %arg3[%c2, %c0_13], %37 {strides = array<i32>} : memref<32x128xf32, #tpu.memory_space<vmem>>, vector<1x128xf32>,
    %cst_14 = arith.constant -57.0247421 : f32
    %39 = vector.broadcast %cst_14 : f32 to vector<16x128xf32>
    %40 = arith.subf %2, %39 : vector<16x128xf32>
    %41 = arith.mulf %40, %40 : vector<16x128xf32>
    %cst_15 = arith.constant 0.000000e+00 : f32
    %42 = vector.broadcast %cst_15 : f32 to vector<16x128xf32>
    %43 = arith.subf %42, %41 : vector<16x128xf32>
    %44 = math.exp %43 : vector<16x128xf32>
    %45 = vector.extract_strided_slice %44 {offsets = [0, 0], sizes = [8, 128], strides = [1, 1]} : vector<16x128xf32> to vector<8x128xf32>
    %46 = vector.extract_strided_slice %44 {offsets = [8, 0], sizes = [8, 128], strides = [1, 1]} : vector<16x128xf32> to vector<8x128xf32>
    %47 = arith.addf %45, %46 : vector<8x128xf32>
    %cst_16 = arith.constant dense<0.000000e+00> : vector<128xf32>
    %48 = vector.multi_reduction <add>, %47, %cst_16 [0] : vector<8x128xf32> to vector<128xf32>
    %49 = vector.shape_cast %48 : vector<128xf32> to vector<1x128xf32>
    %c3 = arith.constant 3 : index
    %c0_17 = arith.constant 0 : index
    %50 = vector.load %arg3[%c3, %c0_17] : memref<32x128xf32, #tpu.memory_space<vmem>>, vector<1x128xf32>
    tpu.vector_store %arg3[%c3, %c0_17], %49 {strides = array<i32>} : memref<32x128xf32, #tpu.memory_space<vmem>>, vector<1x128xf32>,
    %cst_18 = arith.constant -52.4627609 : f32
    %51 = vector.broadcast %cst_18 : f32 to vector<16x128xf32>
    %52 = arith.subf %2, %51 : vector<16x128xf32>
    %53 = arith.mulf %52, %52 : vector<16x128xf32>
    %cst_19 = arith.constant 0.000000e+00 : f32
    %54 = vector.broadcast %cst_19 : f32 to vector<16x128xf32>
    %55 = arith.subf %54, %53 : vector<16x128xf32>
    %56 = math.exp %55 : vector<16x128xf32>
    %57 = vector.extract_strided_slice %56 {offsets = [0, 0], sizes = [8, 128], strides = [1, 1]} : vector<16x128xf32> to vector<8x128xf32>
    %58 = vector.extract_strided_slice %56 {offsets = [8, 0], sizes = [8, 128], strides = [1, 1]} : vector<16x128xf32> to vector<8x128xf32>
    %59 = arith.addf %57, %58 : vector<8x128xf32>
    %cst_20 = arith.constant dense<0.000000e+00> : vector<128xf32>
    %60 = vector.multi_reduction <add>, %59, %cst_20 [0] : vector<8x128xf32> to vector<128xf32>
    %61 = vector.shape_cast %60 : vector<128xf32> to vector<1x128xf32>
    %c4 = arith.constant 4 : index
    %c0_21 = arith.constant 0 : index
    %62 = vector.load %arg3[%c4, %c0_21] : memref<32x128xf32, #tpu.memory_space<vmem>>, vector<1x128xf32>
    tpu.vector_store %arg3[%c4, %c0_21], %61 {strides = array<i32>} : memref<32x128xf32, #tpu.memory_space<vmem>>, vector<1x128xf32>,
    %cst_22 = arith.constant -47.9007835 : f32
    %63 = vector.broadcast %cst_22 : f32 to vector<16x128xf32>
    %64 = arith.subf %2, %63 : vector<16x128xf32>
    %65 = arith.mulf %64, %64 : vector<16x128xf32>
    %cst_23 = arith.constant 0.000000e+00 : f32
    %66 = vector.broadcast %cst_23 : f32 to vector<16x128xf32>
    %67 = arith.subf %66, %65 : vector<16x128xf32>
    %68 = math.exp %67 : vector<16x128xf32>
    %69 = vector.extract_strided_slice %68 {offsets = [0, 0], sizes = [8, 128], strides = [1, 1]} : vector<16x128xf32> to vector<8x128xf32>
    %70 = vector.extract_strided_slice %68 {offsets = [8, 0], sizes = [8, 128], strides = [1, 1]} : vector<16x128xf32> to vector<8x128xf32>
    %71 = arith.addf %69, %70 : vector<8x128xf32>
    %cst_24 = arith.constant dense<0.000000e+00> : vector<128xf32>
    %72 = vector.multi_reduction <add>, %71, %cst_24 [0] : vector<8x128xf32> to vector<128xf32>
    %73 = vector.shape_cast %72 : vector<128xf32> to vector<1x128xf32>
    %c5 = arith.constant 5 : index
    %c0_25 = arith.constant 0 : index
    %74 = vector.load %arg3[%c5, %c0_25] : memref<32x128xf32, #tpu.memory_space<vmem>>, vector<1x128xf32>
    tpu.vector_store %arg3[%c5, %c0_25], %73 {strides = array<i32>} : memref<32x128xf32, #tpu.memory_space<vmem>>, vector<1x128xf32>,
    %cst_26 = arith.constant -43.3388023 : f32
    %75 = vector.broadcast %cst_26 : f32 to vector<16x128xf32>
    %76 = arith.subf %2, %75 : vector<16x128xf32>
    %77 = arith.mulf %76, %76 : vector<16x128xf32>
    %cst_27 = arith.constant 0.000000e+00 : f32
    %78 = vector.broadcast %cst_27 : f32 to vector<16x128xf32>
    %79 = arith.subf %78, %77 : vector<16x128xf32>
    %80 = math.exp %79 : vector<16x128xf32>
    %81 = vector.extract_strided_slice %80 {offsets = [0, 0], sizes = [8, 128], strides = [1, 1]} : vector<16x128xf32> to vector<8x128xf32>
    %82 = vector.extract_strided_slice %80 {offsets = [8, 0], sizes = [8, 128], strides = [1, 1]} : vector<16x128xf32> to vector<8x128xf32>
    %83 = arith.addf %81, %82 : vector<8x128xf32>
    %cst_28 = arith.constant dense<0.000000e+00> : vector<128xf32>
    %84 = vector.multi_reduction <add>, %83, %cst_28 [0] : vector<8x128xf32> to vector<128xf32>
    %85 = vector.shape_cast %84 : vector<128xf32> to vector<1x128xf32>
    %c6 = arith.constant 6 : index
    %c0_29 = arith.constant 0 : index
    %86 = vector.load %arg3[%c6, %c0_29] : memref<32x128xf32, #tpu.memory_space<vmem>>, vector<1x128xf32>
    tpu.vector_store %arg3[%c6, %c0_29], %85 {strides = array<i32>} : memref<32x128xf32, #tpu.memory_space<vmem>>, vector<1x128xf32>,
    %cst_30 = arith.constant -38.776825 : f32
    %87 = vector.broadcast %cst_30 : f32 to vector<16x128xf32>
    %88 = arith.subf %2, %87 : vector<16x128xf32>
    %89 = arith.mulf %88, %88 : vector<16x128xf32>
    %cst_31 = arith.constant 0.000000e+00 : f32
    %90 = vector.broadcast %cst_31 : f32 to vector<16x128xf32>
    %91 = arith.subf %90, %89 : vector<16x128xf32>
    %92 = math.exp %91 : vector<16x128xf32>
    %93 = vector.extract_strided_slice %92 {offsets = [0, 0], sizes = [8, 128], strides = [1, 1]} : vector<16x128xf32> to vector<8x128xf32>
    %94 = vector.extract_strided_slice %92 {offsets = [8, 0], sizes = [8, 128], strides = [1, 1]} : vector<16x128xf32> to vector<8x128xf32>
    %95 = arith.addf %93, %94 : vector<8x128xf32>
    %cst_32 = arith.constant dense<0.000000e+00> : vector<128xf32>
    %96 = vector.multi_reduction <add>, %95, %cst_32 [0] : vector<8x128xf32> to vector<128xf32>
    %97 = vector.shape_cast %96 : vector<128xf32> to vector<1x128xf32>
    %c7 = arith.constant 7 : index
    %c0_33 = arith.constant 0 : index
    %98 = vector.load %arg3[%c7, %c0_33] : memref<32x128xf32, #tpu.memory_space<vmem>>, vector<1x128xf32>
    tpu.vector_store %arg3[%c7, %c0_33], %97 {strides = array<i32>} : memref<32x128xf32, #tpu.memory_space<vmem>>, vector<1x128xf32>,
    %cst_34 = arith.constant -34.2148438 : f32
    %99 = vector.broadcast %cst_34 : f32 to vector<16x128xf32>
    %100 = arith.subf %2, %99 : vector<16x128xf32>
    %101 = arith.mulf %100, %100 : vector<16x128xf32>
    %cst_35 = arith.constant 0.000000e+00 : f32
    %102 = vector.broadcast %cst_35 : f32 to vector<16x128xf32>
    %103 = arith.subf %102, %101 : vector<16x128xf32>
    %104 = math.exp %103 : vector<16x128xf32>
    %105 = vector.extract_strided_slice %104 {offsets = [0, 0], sizes = [8, 128], strides = [1, 1]} : vector<16x128xf32> to vector<8x128xf32>
    %106 = vector.extract_strided_slice %104 {offsets = [8, 0], sizes = [8, 128], strides = [1, 1]} : vector<16x128xf32> to vector<8x128xf32>
    %107 = arith.addf %105, %106 : vector<8x128xf32>
    %cst_36 = arith.constant dense<0.000000e+00> : vector<128xf32>
    %108 = vector.multi_reduction <add>, %107, %cst_36 [0] : vector<8x128xf32> to vector<128xf32>
    %109 = vector.shape_cast %108 : vector<128xf32> to vector<1x128xf32>
    %c8 = arith.constant 8 : index
    %c0_37 = arith.constant 0 : index
    %110 = vector.load %arg3[%c8, %c0_37] : memref<32x128xf32, #tpu.memory_space<vmem>>, vector<1x128xf32>
    tpu.vector_store %arg3[%c8, %c0_37], %109 {strides = array<i32>} : memref<32x128xf32, #tpu.memory_space<vmem>>, vector<1x128xf32>,
    %cst_38 = arith.constant -29.6528645 : f32
    %111 = vector.broadcast %cst_38 : f32 to vector<16x128xf32>
    %112 = arith.subf %2, %111 : vector<16x128xf32>
    %113 = arith.mulf %112, %112 : vector<16x128xf32>
    %cst_39 = arith.constant 0.000000e+00 : f32
    %114 = vector.broadcast %cst_39 : f32 to vector<16x128xf32>
    %115 = arith.subf %114, %113 : vector<16x128xf32>
    %116 = math.exp %115 : vector<16x128xf32>
    %117 = vector.extract_strided_slice %116 {offsets = [0, 0], sizes = [8, 128], strides = [1, 1]} : vector<16x128xf32> to vector<8x128xf32>
    %118 = vector.extract_strided_slice %116 {offsets = [8, 0], sizes = [8, 128], strides = [1, 1]} : vector<16x128xf32> to vector<8x128xf32>
    %119 = arith.addf %117, %118 : vector<8x128xf32>
    %cst_40 = arith.constant dense<0.000000e+00> : vector<128xf32>
    %120 = vector.multi_reduction <add>, %119, %cst_40 [0] : vector<8x128xf32> to vector<128xf32>
    %121 = vector.shape_cast %120 : vector<128xf32> to vector<1x128xf32>
    %c9 = arith.constant 9 : index
    %c0_41 = arith.constant 0 : index
    %122 = vector.load %arg3[%c9, %c0_41] : memref<32x128xf32, #tpu.memory_space<vmem>>, vector<1x128xf32>
    tpu.vector_store %arg3[%c9, %c0_41], %121 {strides = array<i32>} : memref<32x128xf32, #tpu.memory_space<vmem>>, vector<1x128xf32>,
    %cst_42 = arith.constant -25.0908852 : f32
    %123 = vector.broadcast %cst_42 : f32 to vector<16x128xf32>
    %124 = arith.subf %2, %123 : vector<16x128xf32>
    %125 = arith.mulf %124, %124 : vector<16x128xf32>
    %cst_43 = arith.constant 0.000000e+00 : f32
    %126 = vector.broadcast %cst_43 : f32 to vector<16x128xf32>
    %127 = arith.subf %126, %125 : vector<16x128xf32>
    %128 = math.exp %127 : vector<16x128xf32>
    %129 = vector.extract_strided_slice %128 {offsets = [0, 0], sizes = [8, 128], strides = [1, 1]} : vector<16x128xf32> to vector<8x128xf32>
    %130 = vector.extract_strided_slice %128 {offsets = [8, 0], sizes = [8, 128], strides = [1, 1]} : vector<16x128xf32> to vector<8x128xf32>
    %131 = arith.addf %129, %130 : vector<8x128xf32>
    %cst_44 = arith.constant dense<0.000000e+00> : vector<128xf32>
    %132 = vector.multi_reduction <add>, %131, %cst_44 [0] : vector<8x128xf32> to vector<128xf32>
    %133 = vector.shape_cast %132 : vector<128xf32> to vector<1x128xf32>
    %c10 = arith.constant 10 : index
    %c0_45 = arith.constant 0 : index
    %134 = vector.load %arg3[%c10, %c0_45] : memref<32x128xf32, #tpu.memory_space<vmem>>, vector<1x128xf32>
    tpu.vector_store %arg3[%c10, %c0_45], %133 {strides = array<i32>} : memref<32x128xf32, #tpu.memory_space<vmem>>, vector<1x128xf32>,
    %cst_46 = arith.constant -20.5289059 : f32
    %135 = vector.broadcast %cst_46 : f32 to vector<16x128xf32>
    %136 = arith.subf %2, %135 : vector<16x128xf32>
    %137 = arith.mulf %136, %136 : vector<16x128xf32>
    %cst_47 = arith.constant 0.000000e+00 : f32
    %138 = vector.broadcast %cst_47 : f32 to vector<16x128xf32>
    %139 = arith.subf %138, %137 : vector<16x128xf32>
    %140 = math.exp %139 : vector<16x128xf32>
    %141 = vector.extract_strided_slice %140 {offsets = [0, 0], sizes = [8, 128], strides = [1, 1]} : vector<16x128xf32> to vector<8x128xf32>
    %142 = vector.extract_strided_slice %140 {offsets = [8, 0], sizes = [8, 128], strides = [1, 1]} : vector<16x128xf32> to vector<8x128xf32>
    %143 = arith.addf %141, %142 : vector<8x128xf32>
    %cst_48 = arith.constant dense<0.000000e+00> : vector<128xf32>
    %144 = vector.multi_reduction <add>, %143, %cst_48 [0] : vector<8x128xf32> to vector<128xf32>
    %145 = vector.shape_cast %144 : vector<128xf32> to vector<1x128xf32>
    %c11 = arith.constant 11 : index
    %c0_49 = arith.constant 0 : index
    %146 = vector.load %arg3[%c11, %c0_49] : memref<32x128xf32, #tpu.memory_space<vmem>>, vector<1x128xf32>
    tpu.vector_store %arg3[%c11, %c0_49], %145 {strides = array<i32>} : memref<32x128xf32, #tpu.memory_space<vmem>>, vector<1x128xf32>,
    %cst_50 = arith.constant -15.9669275 : f32
    %147 = vector.broadcast %cst_50 : f32 to vector<16x128xf32>
    %148 = arith.subf %2, %147 : vector<16x128xf32>
    %149 = arith.mulf %148, %148 : vector<16x128xf32>
    %cst_51 = arith.constant 0.000000e+00 : f32
    %150 = vector.broadcast %cst_51 : f32 to vector<16x128xf32>
    %151 = arith.subf %150, %149 : vector<16x128xf32>
    %152 = math.exp %151 : vector<16x128xf32>
    %153 = vector.extract_strided_slice %152 {offsets = [0, 0], sizes = [8, 128], strides = [1, 1]} : vector<16x128xf32> to vector<8x128xf32>
    %154 = vector.extract_strided_slice %152 {offsets = [8, 0], sizes = [8, 128], strides = [1, 1]} : vector<16x128xf32> to vector<8x128xf32>
    %155 = arith.addf %153, %154 : vector<8x128xf32>
    %cst_52 = arith.constant dense<0.000000e+00> : vector<128xf32>
    %156 = vector.multi_reduction <add>, %155, %cst_52 [0] : vector<8x128xf32> to vector<128xf32>
    %157 = vector.shape_cast %156 : vector<128xf32> to vector<1x128xf32>
    %c12 = arith.constant 12 : index
    %c0_53 = arith.constant 0 : index
    %158 = vector.load %arg3[%c12, %c0_53] : memref<32x128xf32, #tpu.memory_space<vmem>>, vector<1x128xf32>
    tpu.vector_store %arg3[%c12, %c0_53], %157 {strides = array<i32>} : memref<32x128xf32, #tpu.memory_space<vmem>>, vector<1x128xf32>,
    %cst_54 = arith.constant -11.4049482 : f32
    %159 = vector.broadcast %cst_54 : f32 to vector<16x128xf32>
    %160 = arith.subf %2, %159 : vector<16x128xf32>
    %161 = arith.mulf %160, %160 : vector<16x128xf32>
    %cst_55 = arith.constant 0.000000e+00 : f32
    %162 = vector.broadcast %cst_55 : f32 to vector<16x128xf32>
    %163 = arith.subf %162, %161 : vector<16x128xf32>
    %164 = math.exp %163 : vector<16x128xf32>
    %165 = vector.extract_strided_slice %164 {offsets = [0, 0], sizes = [8, 128], strides = [1, 1]} : vector<16x128xf32> to vector<8x128xf32>
    %166 = vector.extract_strided_slice %164 {offsets = [8, 0], sizes = [8, 128], strides = [1, 1]} : vector<16x128xf32> to vector<8x128xf32>
    %167 = arith.addf %165, %166 : vector<8x128xf32>
    %cst_56 = arith.constant dense<0.000000e+00> : vector<128xf32>
    %168 = vector.multi_reduction <add>, %167, %cst_56 [0] : vector<8x128xf32> to vector<128xf32>
    %169 = vector.shape_cast %168 : vector<128xf32> to vector<1x128xf32>
    %c13 = arith.constant 13 : index
    %c0_57 = arith.constant 0 : index
    %170 = vector.load %arg3[%c13, %c0_57] : memref<32x128xf32, #tpu.memory_space<vmem>>, vector<1x128xf32>
    tpu.vector_store %arg3[%c13, %c0_57], %169 {strides = array<i32>} : memref<32x128xf32, #tpu.memory_space<vmem>>, vector<1x128xf32>,
    %cst_58 = arith.constant -6.84296894 : f32
    %171 = vector.broadcast %cst_58 : f32 to vector<16x128xf32>
    %172 = arith.subf %2, %171 : vector<16x128xf32>
    %173 = arith.mulf %172, %172 : vector<16x128xf32>
    %cst_59 = arith.constant 0.000000e+00 : f32
    %174 = vector.broadcast %cst_59 : f32 to vector<16x128xf32>
    %175 = arith.subf %174, %173 : vector<16x128xf32>
    %176 = math.exp %175 : vector<16x128xf32>
    %177 = vector.extract_strided_slice %176 {offsets = [0, 0], sizes = [8, 128], strides = [1, 1]} : vector<16x128xf32> to vector<8x128xf32>
    %178 = vector.extract_strided_slice %176 {offsets = [8, 0], sizes = [8, 128], strides = [1, 1]} : vector<16x128xf32> to vector<8x128xf32>
    %179 = arith.addf %177, %178 : vector<8x128xf32>
    %cst_60 = arith.constant dense<0.000000e+00> : vector<128xf32>
    %180 = vector.multi_reduction <add>, %179, %cst_60 [0] : vector<8x128xf32> to vector<128xf32>
    %181 = vector.shape_cast %180 : vector<128xf32> to vector<1x128xf32>
    %c14 = arith.constant 14 : index
    %c0_61 = arith.constant 0 : index
    %182 = vector.load %arg3[%c14, %c0_61] : memref<32x128xf32, #tpu.memory_space<vmem>>, vector<1x128xf32>
    tpu.vector_store %arg3[%c14, %c0_61], %181 {strides = array<i32>} : memref<32x128xf32, #tpu.memory_space<vmem>>, vector<1x128xf32>,
    %cst_62 = arith.constant -2.28098965 : f32
    %183 = vector.broadcast %cst_62 : f32 to vector<16x128xf32>
    %184 = arith.subf %2, %183 : vector<16x128xf32>
    %185 = arith.mulf %184, %184 : vector<16x128xf32>
    %cst_63 = arith.constant 0.000000e+00 : f32
    %186 = vector.broadcast %cst_63 : f32 to vector<16x128xf32>
    %187 = arith.subf %186, %185 : vector<16x128xf32>
    %188 = math.exp %187 : vector<16x128xf32>
    %189 = vector.extract_strided_slice %188 {offsets = [0, 0], sizes = [8, 128], strides = [1, 1]} : vector<16x128xf32> to vector<8x128xf32>
    %190 = vector.extract_strided_slice %188 {offsets = [8, 0], sizes = [8, 128], strides = [1, 1]} : vector<16x128xf32> to vector<8x128xf32>
    %191 = arith.addf %189, %190 : vector<8x128xf32>
    %cst_64 = arith.constant dense<0.000000e+00> : vector<128xf32>
    %192 = vector.multi_reduction <add>, %191, %cst_64 [0] : vector<8x128xf32> to vector<128xf32>
    %193 = vector.shape_cast %192 : vector<128xf32> to vector<1x128xf32>
    %c15 = arith.constant 15 : index
    %c0_65 = arith.constant 0 : index
    %194 = vector.load %arg3[%c15, %c0_65] : memref<32x128xf32, #tpu.memory_space<vmem>>, vector<1x128xf32>
    tpu.vector_store %arg3[%c15, %c0_65], %193 {strides = array<i32>} : memref<32x128xf32, #tpu.memory_space<vmem>>, vector<1x128xf32>,
    %cst_66 = arith.constant 2.28098965 : f32
    %195 = vector.broadcast %cst_66 : f32 to vector<16x128xf32>
    %196 = arith.subf %2, %195 : vector<16x128xf32>
    %197 = arith.mulf %196, %196 : vector<16x128xf32>
    %cst_67 = arith.constant 0.000000e+00 : f32
    %198 = vector.broadcast %cst_67 : f32 to vector<16x128xf32>
    %199 = arith.subf %198, %197 : vector<16x128xf32>
    %200 = math.exp %199 : vector<16x128xf32>
    %201 = vector.extract_strided_slice %200 {offsets = [0, 0], sizes = [8, 128], strides = [1, 1]} : vector<16x128xf32> to vector<8x128xf32>
    %202 = vector.extract_strided_slice %200 {offsets = [8, 0], sizes = [8, 128], strides = [1, 1]} : vector<16x128xf32> to vector<8x128xf32>
    %203 = arith.addf %201, %202 : vector<8x128xf32>
    %cst_68 = arith.constant dense<0.000000e+00> : vector<128xf32>
    %204 = vector.multi_reduction <add>, %203, %cst_68 [0] : vector<8x128xf32> to vector<128xf32>
    %205 = vector.shape_cast %204 : vector<128xf32> to vector<1x128xf32>
    %c16 = arith.constant 16 : index
    %c0_69 = arith.constant 0 : index
    %206 = vector.load %arg3[%c16, %c0_69] : memref<32x128xf32, #tpu.memory_space<vmem>>, vector<1x128xf32>
    tpu.vector_store %arg3[%c16, %c0_69], %205 {strides = array<i32>} : memref<32x128xf32, #tpu.memory_space<vmem>>, vector<1x128xf32>,
    %cst_70 = arith.constant 6.84296894 : f32
    %207 = vector.broadcast %cst_70 : f32 to vector<16x128xf32>
    %208 = arith.subf %2, %207 : vector<16x128xf32>
    %209 = arith.mulf %208, %208 : vector<16x128xf32>
    %cst_71 = arith.constant 0.000000e+00 : f32
    %210 = vector.broadcast %cst_71 : f32 to vector<16x128xf32>
    %211 = arith.subf %210, %209 : vector<16x128xf32>
    %212 = math.exp %211 : vector<16x128xf32>
    %213 = vector.extract_strided_slice %212 {offsets = [0, 0], sizes = [8, 128], strides = [1, 1]} : vector<16x128xf32> to vector<8x128xf32>
    %214 = vector.extract_strided_slice %212 {offsets = [8, 0], sizes = [8, 128], strides = [1, 1]} : vector<16x128xf32> to vector<8x128xf32>
    %215 = arith.addf %213, %214 : vector<8x128xf32>
    %cst_72 = arith.constant dense<0.000000e+00> : vector<128xf32>
    %216 = vector.multi_reduction <add>, %215, %cst_72 [0] : vector<8x128xf32> to vector<128xf32>
    %217 = vector.shape_cast %216 : vector<128xf32> to vector<1x128xf32>
    %c17 = arith.constant 17 : index
    %c0_73 = arith.constant 0 : index
    %218 = vector.load %arg3[%c17, %c0_73] : memref<32x128xf32, #tpu.memory_space<vmem>>, vector<1x128xf32>
    tpu.vector_store %arg3[%c17, %c0_73], %217 {strides = array<i32>} : memref<32x128xf32, #tpu.memory_space<vmem>>, vector<1x128xf32>,
    %cst_74 = arith.constant 11.4049482 : f32
    %219 = vector.broadcast %cst_74 : f32 to vector<16x128xf32>
    %220 = arith.subf %2, %219 : vector<16x128xf32>
    %221 = arith.mulf %220, %220 : vector<16x128xf32>
    %cst_75 = arith.constant 0.000000e+00 : f32
    %222 = vector.broadcast %cst_75 : f32 to vector<16x128xf32>
    %223 = arith.subf %222, %221 : vector<16x128xf32>
    %224 = math.exp %223 : vector<16x128xf32>
    %225 = vector.extract_strided_slice %224 {offsets = [0, 0], sizes = [8, 128], strides = [1, 1]} : vector<16x128xf32> to vector<8x128xf32>
    %226 = vector.extract_strided_slice %224 {offsets = [8, 0], sizes = [8, 128], strides = [1, 1]} : vector<16x128xf32> to vector<8x128xf32>
    %227 = arith.addf %225, %226 : vector<8x128xf32>
    %cst_76 = arith.constant dense<0.000000e+00> : vector<128xf32>
    %228 = vector.multi_reduction <add>, %227, %cst_76 [0] : vector<8x128xf32> to vector<128xf32>
    %229 = vector.shape_cast %228 : vector<128xf32> to vector<1x128xf32>
    %c18 = arith.constant 18 : index
    %c0_77 = arith.constant 0 : index
    %230 = vector.load %arg3[%c18, %c0_77] : memref<32x128xf32, #tpu.memory_space<vmem>>, vector<1x128xf32>
    tpu.vector_store %arg3[%c18, %c0_77], %229 {strides = array<i32>} : memref<32x128xf32, #tpu.memory_space<vmem>>, vector<1x128xf32>,
    %cst_78 = arith.constant 15.9669275 : f32
    %231 = vector.broadcast %cst_78 : f32 to vector<16x128xf32>
    %232 = arith.subf %2, %231 : vector<16x128xf32>
    %233 = arith.mulf %232, %232 : vector<16x128xf32>
    %cst_79 = arith.constant 0.000000e+00 : f32
    %234 = vector.broadcast %cst_79 : f32 to vector<16x128xf32>
    %235 = arith.subf %234, %233 : vector<16x128xf32>
    %236 = math.exp %235 : vector<16x128xf32>
    %237 = vector.extract_strided_slice %236 {offsets = [0, 0], sizes = [8, 128], strides = [1, 1]} : vector<16x128xf32> to vector<8x128xf32>
    %238 = vector.extract_strided_slice %236 {offsets = [8, 0], sizes = [8, 128], strides = [1, 1]} : vector<16x128xf32> to vector<8x128xf32>
    %239 = arith.addf %237, %238 : vector<8x128xf32>
    %cst_80 = arith.constant dense<0.000000e+00> : vector<128xf32>
    %240 = vector.multi_reduction <add>, %239, %cst_80 [0] : vector<8x128xf32> to vector<128xf32>
    %241 = vector.shape_cast %240 : vector<128xf32> to vector<1x128xf32>
    %c19 = arith.constant 19 : index
    %c0_81 = arith.constant 0 : index
    %242 = vector.load %arg3[%c19, %c0_81] : memref<32x128xf32, #tpu.memory_space<vmem>>, vector<1x128xf32>
    tpu.vector_store %arg3[%c19, %c0_81], %241 {strides = array<i32>} : memref<32x128xf32, #tpu.memory_space<vmem>>, vector<1x128xf32>,
    %cst_82 = arith.constant 20.5289059 : f32
    %243 = vector.broadcast %cst_82 : f32 to vector<16x128xf32>
    %244 = arith.subf %2, %243 : vector<16x128xf32>
    %245 = arith.mulf %244, %244 : vector<16x128xf32>
    %cst_83 = arith.constant 0.000000e+00 : f32
    %246 = vector.broadcast %cst_83 : f32 to vector<16x128xf32>
    %247 = arith.subf %246, %245 : vector<16x128xf32>
    %248 = math.exp %247 : vector<16x128xf32>
    %249 = vector.extract_strided_slice %248 {offsets = [0, 0], sizes = [8, 128], strides = [1, 1]} : vector<16x128xf32> to vector<8x128xf32>
    %250 = vector.extract_strided_slice %248 {offsets = [8, 0], sizes = [8, 128], strides = [1, 1]} : vector<16x128xf32> to vector<8x128xf32>
    %251 = arith.addf %249, %250 : vector<8x128xf32>
    %cst_84 = arith.constant dense<0.000000e+00> : vector<128xf32>
    %252 = vector.multi_reduction <add>, %251, %cst_84 [0] : vector<8x128xf32> to vector<128xf32>
    %253 = vector.shape_cast %252 : vector<128xf32> to vector<1x128xf32>
    %c20 = arith.constant 20 : index
    %c0_85 = arith.constant 0 : index
    %254 = vector.load %arg3[%c20, %c0_85] : memref<32x128xf32, #tpu.memory_space<vmem>>, vector<1x128xf32>
    tpu.vector_store %arg3[%c20, %c0_85], %253 {strides = array<i32>} : memref<32x128xf32, #tpu.memory_space<vmem>>, vector<1x128xf32>,
    %cst_86 = arith.constant 25.0908852 : f32
    %255 = vector.broadcast %cst_86 : f32 to vector<16x128xf32>
    %256 = arith.subf %2, %255 : vector<16x128xf32>
    %257 = arith.mulf %256, %256 : vector<16x128xf32>
    %cst_87 = arith.constant 0.000000e+00 : f32
    %258 = vector.broadcast %cst_87 : f32 to vector<16x128xf32>
    %259 = arith.subf %258, %257 : vector<16x128xf32>
    %260 = math.exp %259 : vector<16x128xf32>
    %261 = vector.extract_strided_slice %260 {offsets = [0, 0], sizes = [8, 128], strides = [1, 1]} : vector<16x128xf32> to vector<8x128xf32>
    %262 = vector.extract_strided_slice %260 {offsets = [8, 0], sizes = [8, 128], strides = [1, 1]} : vector<16x128xf32> to vector<8x128xf32>
    %263 = arith.addf %261, %262 : vector<8x128xf32>
    %cst_88 = arith.constant dense<0.000000e+00> : vector<128xf32>
    %264 = vector.multi_reduction <add>, %263, %cst_88 [0] : vector<8x128xf32> to vector<128xf32>
    %265 = vector.shape_cast %264 : vector<128xf32> to vector<1x128xf32>
    %c21 = arith.constant 21 : index
    %c0_89 = arith.constant 0 : index
    %266 = vector.load %arg3[%c21, %c0_89] : memref<32x128xf32, #tpu.memory_space<vmem>>, vector<1x128xf32>
    tpu.vector_store %arg3[%c21, %c0_89], %265 {strides = array<i32>} : memref<32x128xf32, #tpu.memory_space<vmem>>, vector<1x128xf32>,
    %cst_90 = arith.constant 29.6528645 : f32
    %267 = vector.broadcast %cst_90 : f32 to vector<16x128xf32>
    %268 = arith.subf %2, %267 : vector<16x128xf32>
    %269 = arith.mulf %268, %268 : vector<16x128xf32>
    %cst_91 = arith.constant 0.000000e+00 : f32
    %270 = vector.broadcast %cst_91 : f32 to vector<16x128xf32>
    %271 = arith.subf %270, %269 : vector<16x128xf32>
    %272 = math.exp %271 : vector<16x128xf32>
    %273 = vector.extract_strided_slice %272 {offsets = [0, 0], sizes = [8, 128], strides = [1, 1]} : vector<16x128xf32> to vector<8x128xf32>
    %274 = vector.extract_strided_slice %272 {offsets = [8, 0], sizes = [8, 128], strides = [1, 1]} : vector<16x128xf32> to vector<8x128xf32>
    %275 = arith.addf %273, %274 : vector<8x128xf32>
    %cst_92 = arith.constant dense<0.000000e+00> : vector<128xf32>
    %276 = vector.multi_reduction <add>, %275, %cst_92 [0] : vector<8x128xf32> to vector<128xf32>
    %277 = vector.shape_cast %276 : vector<128xf32> to vector<1x128xf32>
    %c22 = arith.constant 22 : index
    %c0_93 = arith.constant 0 : index
    %278 = vector.load %arg3[%c22, %c0_93] : memref<32x128xf32, #tpu.memory_space<vmem>>, vector<1x128xf32>
    tpu.vector_store %arg3[%c22, %c0_93], %277 {strides = array<i32>} : memref<32x128xf32, #tpu.memory_space<vmem>>, vector<1x128xf32>,
    %cst_94 = arith.constant 34.2148438 : f32
    %279 = vector.broadcast %cst_94 : f32 to vector<16x128xf32>
    %280 = arith.subf %2, %279 : vector<16x128xf32>
    %281 = arith.mulf %280, %280 : vector<16x128xf32>
    %cst_95 = arith.constant 0.000000e+00 : f32
    %282 = vector.broadcast %cst_95 : f32 to vector<16x128xf32>
    %283 = arith.subf %282, %281 : vector<16x128xf32>
    %284 = math.exp %283 : vector<16x128xf32>
    %285 = vector.extract_strided_slice %284 {offsets = [0, 0], sizes = [8, 128], strides = [1, 1]} : vector<16x128xf32> to vector<8x128xf32>
    %286 = vector.extract_strided_slice %284 {offsets = [8, 0], sizes = [8, 128], strides = [1, 1]} : vector<16x128xf32> to vector<8x128xf32>
    %287 = arith.addf %285, %286 : vector<8x128xf32>
    %cst_96 = arith.constant dense<0.000000e+00> : vector<128xf32>
    %288 = vector.multi_reduction <add>, %287, %cst_96 [0] : vector<8x128xf32> to vector<128xf32>
    %289 = vector.shape_cast %288 : vector<128xf32> to vector<1x128xf32>
    %c23 = arith.constant 23 : index
    %c0_97 = arith.constant 0 : index
    %290 = vector.load %arg3[%c23, %c0_97] : memref<32x128xf32, #tpu.memory_space<vmem>>, vector<1x128xf32>
    tpu.vector_store %arg3[%c23, %c0_97], %289 {strides = array<i32>} : memref<32x128xf32, #tpu.memory_space<vmem>>, vector<1x128xf32>,
    %cst_98 = arith.constant 38.776825 : f32
    %291 = vector.broadcast %cst_98 : f32 to vector<16x128xf32>
    %292 = arith.subf %2, %291 : vector<16x128xf32>
    %293 = arith.mulf %292, %292 : vector<16x128xf32>
    %cst_99 = arith.constant 0.000000e+00 : f32
    %294 = vector.broadcast %cst_99 : f32 to vector<16x128xf32>
    %295 = arith.subf %294, %293 : vector<16x128xf32>
    %296 = math.exp %295 : vector<16x128xf32>
    %297 = vector.extract_strided_slice %296 {offsets = [0, 0], sizes = [8, 128], strides = [1, 1]} : vector<16x128xf32> to vector<8x128xf32>
    %298 = vector.extract_strided_slice %296 {offsets = [8, 0], sizes = [8, 128], strides = [1, 1]} : vector<16x128xf32> to vector<8x128xf32>
    %299 = arith.addf %297, %298 : vector<8x128xf32>
    %cst_100 = arith.constant dense<0.000000e+00> : vector<128xf32>
    %300 = vector.multi_reduction <add>, %299, %cst_100 [0] : vector<8x128xf32> to vector<128xf32>
    %301 = vector.shape_cast %300 : vector<128xf32> to vector<1x128xf32>
    %c24 = arith.constant 24 : index
    %c0_101 = arith.constant 0 : index
    %302 = vector.load %arg3[%c24, %c0_101] : memref<32x128xf32, #tpu.memory_space<vmem>>, vector<1x128xf32>
    tpu.vector_store %arg3[%c24, %c0_101], %301 {strides = array<i32>} : memref<32x128xf32, #tpu.memory_space<vmem>>, vector<1x128xf32>,
    %cst_102 = arith.constant 43.3388023 : f32
    %303 = vector.broadcast %cst_102 : f32 to vector<16x128xf32>
    %304 = arith.subf %2, %303 : vector<16x128xf32>
    %305 = arith.mulf %304, %304 : vector<16x128xf32>
    %cst_103 = arith.constant 0.000000e+00 : f32
    %306 = vector.broadcast %cst_103 : f32 to vector<16x128xf32>
    %307 = arith.subf %306, %305 : vector<16x128xf32>
    %308 = math.exp %307 : vector<16x128xf32>
    %309 = vector.extract_strided_slice %308 {offsets = [0, 0], sizes = [8, 128], strides = [1, 1]} : vector<16x128xf32> to vector<8x128xf32>
    %310 = vector.extract_strided_slice %308 {offsets = [8, 0], sizes = [8, 128], strides = [1, 1]} : vector<16x128xf32> to vector<8x128xf32>
    %311 = arith.addf %309, %310 : vector<8x128xf32>
    %cst_104 = arith.constant dense<0.000000e+00> : vector<128xf32>
    %312 = vector.multi_reduction <add>, %311, %cst_104 [0] : vector<8x128xf32> to vector<128xf32>
    %313 = vector.shape_cast %312 : vector<128xf32> to vector<1x128xf32>
    %c25 = arith.constant 25 : index
    %c0_105 = arith.constant 0 : index
    %314 = vector.load %arg3[%c25, %c0_105] : memref<32x128xf32, #tpu.memory_space<vmem>>, vector<1x128xf32>
    tpu.vector_store %arg3[%c25, %c0_105], %313 {strides = array<i32>} : memref<32x128xf32, #tpu.memory_space<vmem>>, vector<1x128xf32>,
    %cst_106 = arith.constant 47.9007835 : f32
    %315 = vector.broadcast %cst_106 : f32 to vector<16x128xf32>
    %316 = arith.subf %2, %315 : vector<16x128xf32>
    %317 = arith.mulf %316, %316 : vector<16x128xf32>
    %cst_107 = arith.constant 0.000000e+00 : f32
    %318 = vector.broadcast %cst_107 : f32 to vector<16x128xf32>
    %319 = arith.subf %318, %317 : vector<16x128xf32>
    %320 = math.exp %319 : vector<16x128xf32>
    %321 = vector.extract_strided_slice %320 {offsets = [0, 0], sizes = [8, 128], strides = [1, 1]} : vector<16x128xf32> to vector<8x128xf32>
    %322 = vector.extract_strided_slice %320 {offsets = [8, 0], sizes = [8, 128], strides = [1, 1]} : vector<16x128xf32> to vector<8x128xf32>
    %323 = arith.addf %321, %322 : vector<8x128xf32>
    %cst_108 = arith.constant dense<0.000000e+00> : vector<128xf32>
    %324 = vector.multi_reduction <add>, %323, %cst_108 [0] : vector<8x128xf32> to vector<128xf32>
    %325 = vector.shape_cast %324 : vector<128xf32> to vector<1x128xf32>
    %c26 = arith.constant 26 : index
    %c0_109 = arith.constant 0 : index
    %326 = vector.load %arg3[%c26, %c0_109] : memref<32x128xf32, #tpu.memory_space<vmem>>, vector<1x128xf32>
    tpu.vector_store %arg3[%c26, %c0_109], %325 {strides = array<i32>} : memref<32x128xf32, #tpu.memory_space<vmem>>, vector<1x128xf32>,
    %cst_110 = arith.constant 52.4627609 : f32
    %327 = vector.broadcast %cst_110 : f32 to vector<16x128xf32>
    %328 = arith.subf %2, %327 : vector<16x128xf32>
    %329 = arith.mulf %328, %328 : vector<16x128xf32>
    %cst_111 = arith.constant 0.000000e+00 : f32
    %330 = vector.broadcast %cst_111 : f32 to vector<16x128xf32>
    %331 = arith.subf %330, %329 : vector<16x128xf32>
    %332 = math.exp %331 : vector<16x128xf32>
    %333 = vector.extract_strided_slice %332 {offsets = [0, 0], sizes = [8, 128], strides = [1, 1]} : vector<16x128xf32> to vector<8x128xf32>
    %334 = vector.extract_strided_slice %332 {offsets = [8, 0], sizes = [8, 128], strides = [1, 1]} : vector<16x128xf32> to vector<8x128xf32>
    %335 = arith.addf %333, %334 : vector<8x128xf32>
    %cst_112 = arith.constant dense<0.000000e+00> : vector<128xf32>
    %336 = vector.multi_reduction <add>, %335, %cst_112 [0] : vector<8x128xf32> to vector<128xf32>
    %337 = vector.shape_cast %336 : vector<128xf32> to vector<1x128xf32>
    %c27 = arith.constant 27 : index
    %c0_113 = arith.constant 0 : index
    %338 = vector.load %arg3[%c27, %c0_113] : memref<32x128xf32, #tpu.memory_space<vmem>>, vector<1x128xf32>
    tpu.vector_store %arg3[%c27, %c0_113], %337 {strides = array<i32>} : memref<32x128xf32, #tpu.memory_space<vmem>>, vector<1x128xf32>,
    %cst_114 = arith.constant 57.0247421 : f32
    %339 = vector.broadcast %cst_114 : f32 to vector<16x128xf32>
    %340 = arith.subf %2, %339 : vector<16x128xf32>
    %341 = arith.mulf %340, %340 : vector<16x128xf32>
    %cst_115 = arith.constant 0.000000e+00 : f32
    %342 = vector.broadcast %cst_115 : f32 to vector<16x128xf32>
    %343 = arith.subf %342, %341 : vector<16x128xf32>
    %344 = math.exp %343 : vector<16x128xf32>
    %345 = vector.extract_strided_slice %344 {offsets = [0, 0], sizes = [8, 128], strides = [1, 1]} : vector<16x128xf32> to vector<8x128xf32>
    %346 = vector.extract_strided_slice %344 {offsets = [8, 0], sizes = [8, 128], strides = [1, 1]} : vector<16x128xf32> to vector<8x128xf32>
    %347 = arith.addf %345, %346 : vector<8x128xf32>
    %cst_116 = arith.constant dense<0.000000e+00> : vector<128xf32>
    %348 = vector.multi_reduction <add>, %347, %cst_116 [0] : vector<8x128xf32> to vector<128xf32>
    %349 = vector.shape_cast %348 : vector<128xf32> to vector<1x128xf32>
    %c28 = arith.constant 28 : index
    %c0_117 = arith.constant 0 : index
    %350 = vector.load %arg3[%c28, %c0_117] : memref<32x128xf32, #tpu.memory_space<vmem>>, vector<1x128xf32>
    tpu.vector_store %arg3[%c28, %c0_117], %349 {strides = array<i32>} : memref<32x128xf32, #tpu.memory_space<vmem>>, vector<1x128xf32>,
    %cst_118 = arith.constant 61.5867195 : f32
    %351 = vector.broadcast %cst_118 : f32 to vector<16x128xf32>
    %352 = arith.subf %2, %351 : vector<16x128xf32>
    %353 = arith.mulf %352, %352 : vector<16x128xf32>
    %cst_119 = arith.constant 0.000000e+00 : f32
    %354 = vector.broadcast %cst_119 : f32 to vector<16x128xf32>
    %355 = arith.subf %354, %353 : vector<16x128xf32>
    %356 = math.exp %355 : vector<16x128xf32>
    %357 = vector.extract_strided_slice %356 {offsets = [0, 0], sizes = [8, 128], strides = [1, 1]} : vector<16x128xf32> to vector<8x128xf32>
    %358 = vector.extract_strided_slice %356 {offsets = [8, 0], sizes = [8, 128], strides = [1, 1]} : vector<16x128xf32> to vector<8x128xf32>
    %359 = arith.addf %357, %358 : vector<8x128xf32>
    %cst_120 = arith.constant dense<0.000000e+00> : vector<128xf32>
    %360 = vector.multi_reduction <add>, %359, %cst_120 [0] : vector<8x128xf32> to vector<128xf32>
    %361 = vector.shape_cast %360 : vector<128xf32> to vector<1x128xf32>
    %c29 = arith.constant 29 : index
    %c0_121 = arith.constant 0 : index
    %362 = vector.load %arg3[%c29, %c0_121] : memref<32x128xf32, #tpu.memory_space<vmem>>, vector<1x128xf32>
    tpu.vector_store %arg3[%c29, %c0_121], %361 {strides = array<i32>} : memref<32x128xf32, #tpu.memory_space<vmem>>, vector<1x128xf32>,
    %cst_122 = arith.constant 66.1486968 : f32
    %363 = vector.broadcast %cst_122 : f32 to vector<16x128xf32>
    %364 = arith.subf %2, %363 : vector<16x128xf32>
    %365 = arith.mulf %364, %364 : vector<16x128xf32>
    %cst_123 = arith.constant 0.000000e+00 : f32
    %366 = vector.broadcast %cst_123 : f32 to vector<16x128xf32>
    %367 = arith.subf %366, %365 : vector<16x128xf32>
    %368 = math.exp %367 : vector<16x128xf32>
    %369 = vector.extract_strided_slice %368 {offsets = [0, 0], sizes = [8, 128], strides = [1, 1]} : vector<16x128xf32> to vector<8x128xf32>
    %370 = vector.extract_strided_slice %368 {offsets = [8, 0], sizes = [8, 128], strides = [1, 1]} : vector<16x128xf32> to vector<8x128xf32>
    %371 = arith.addf %369, %370 : vector<8x128xf32>
    %cst_124 = arith.constant dense<0.000000e+00> : vector<128xf32>
    %372 = vector.multi_reduction <add>, %371, %cst_124 [0] : vector<8x128xf32> to vector<128xf32>
    %373 = vector.shape_cast %372 : vector<128xf32> to vector<1x128xf32>
    %c30 = arith.constant 30 : index
    %c0_125 = arith.constant 0 : index
    %374 = vector.load %arg3[%c30, %c0_125] : memref<32x128xf32, #tpu.memory_space<vmem>>, vector<1x128xf32>
    tpu.vector_store %arg3[%c30, %c0_125], %373 {strides = array<i32>} : memref<32x128xf32, #tpu.memory_space<vmem>>, vector<1x128xf32>,
    %cst_126 = arith.constant 70.7106781 : f32
    %375 = vector.broadcast %cst_126 : f32 to vector<16x128xf32>
    %376 = arith.subf %2, %375 : vector<16x128xf32>
    %377 = arith.mulf %376, %376 : vector<16x128xf32>
    %cst_127 = arith.constant 0.000000e+00 : f32
    %378 = vector.broadcast %cst_127 : f32 to vector<16x128xf32>
    %379 = arith.subf %378, %377 : vector<16x128xf32>
    %380 = math.exp %379 : vector<16x128xf32>
    %381 = vector.extract_strided_slice %380 {offsets = [0, 0], sizes = [8, 128], strides = [1, 1]} : vector<16x128xf32> to vector<8x128xf32>
    %382 = vector.extract_strided_slice %380 {offsets = [8, 0], sizes = [8, 128], strides = [1, 1]} : vector<16x128xf32> to vector<8x128xf32>
    %383 = arith.addf %381, %382 : vector<8x128xf32>
    %cst_128 = arith.constant dense<0.000000e+00> : vector<128xf32>
    %384 = vector.multi_reduction <add>, %383, %cst_128 [0] : vector<8x128xf32> to vector<128xf32>
    %385 = vector.shape_cast %384 : vector<128xf32> to vector<1x128xf32>
    %c31 = arith.constant 31 : index
    %c0_129 = arith.constant 0 : index
    %386 = vector.load %arg3[%c31, %c0_129] : memref<32x128xf32, #tpu.memory_space<vmem>>, vector<1x128xf32>
    tpu.vector_store %arg3[%c31, %c0_129], %385 {strides = array<i32>} : memref<32x128xf32, #tpu.memory_space<vmem>>, vector<1x128xf32>,
    %c0_130 = arith.constant 0 : index
    %c0_131 = arith.constant 0 : index
    %387 = vector.load %arg3[%c0_130, %c0_131] : memref<32x128xf32, #tpu.memory_space<vmem>>, vector<32x128xf32>
    %cst_132 = arith.constant dense<0.000000e+00> : vector<128xf32>
    %388 = vector.multi_reduction <add>, %387, %cst_132 [0] : vector<32x128xf32> to vector<128xf32>
    %389 = vector.shape_cast %388 : vector<128xf32> to vector<1x128xf32>
    %cst_133 = arith.constant 1.000000e-30 : f32
    %390 = vector.broadcast %cst_133 : f32 to vector<1x128xf32>
    %391 = arith.addf %389, %390 : vector<1x128xf32>
    %392 = tpu.reciprocal %391 : vector<1x128xf32> -> vector<1x128xf32>
    %393 = vector.broadcast %392 : vector<1x128xf32> to vector<32x128xf32>
    %394 = arith.mulf %387, %393 : vector<32x128xf32>
    %cst_134 = arith.constant 1.000000e-30 : f32
    %395 = vector.broadcast %cst_134 : f32 to vector<32x128xf32>
    %396 = arith.addf %394, %395 : vector<32x128xf32>
    %397 = math.log %396 : vector<32x128xf32>
    %398 = arith.mulf %396, %397 : vector<32x128xf32>
    %cst_135 = arith.constant dense<0.000000e+00> : vector<128xf32>
    %399 = vector.multi_reduction <add>, %398, %cst_135 [0] : vector<32x128xf32> to vector<128xf32>
    %400 = vector.shape_cast %399 : vector<128xf32> to vector<1x128xf32>
    %cst_136 = arith.constant 0.000000e+00 : f32
    %401 = vector.broadcast %cst_136 : f32 to vector<1x128xf32>
    %402 = arith.subf %401, %400 : vector<1x128xf32>
    %c0_137 = arith.constant 0 : index
    %c0_138 = arith.constant 0 : index
    %403 = vector.load %arg2[%c0_137, %c0_138] : memref<1x128xf32, #tpu.memory_space<vmem>>, vector<1x128xf32>
    tpu.vector_store %arg2[%c0_137, %c0_138], %402 {strides = array<i32>} : memref<1x128xf32, #tpu.memory_space<vmem>>, vector<1x128xf32>,
    return
  }
  func.func @transform_0(%arg0: i32) -> (i32, i32) {
    %c0_i32 = arith.constant 0 : i32
    %c0_i32_0 = arith.constant 0 : i32
    return %c0_i32, %arg0 : i32, i32
  }
  func.func @transform_1(%arg0: i32) -> (i32, i32) {
    %c0_i32 = arith.constant 0 : i32
    %c0_i32_0 = arith.constant 0 : i32
    return %c0_i32, %arg0 : i32, i32
  }
}

</mosaic_0001>

<llo_original>
// kernel: tpu_custom_call.1
$region0: #{tpu_custom_call.1}
  #allocation0 [shape = 'u32[]', space=smem, size = 0x4, offset = 0x4, fixed_abs, tag = 'smem constant byte address 0x4 - core index']
  #allocation1 [shape = 'u32[72,128]{1,0:T(1,128)}', space=vmem, size = 0x9000, scoped, tag = 'internal scratch']
  #allocation2 [shape = 'f32[32,128]{1,0:T(8,128)}', space=vmem, size = 0x4000, scoped, tag = 'scratch operand']
  %s0 = inlined_call_operand.hbm [shape: f32[16,128], index: 0, kind: input, shape index: {}]
  %s1 = inlined_call_operand.hbm [shape: f32[1,128], index: 1, kind: output, shape index: {}]
  %s2 = sld [smem:[#allocation0]]
  $region18: #{tpu_custom_call.1} parent=0
    _
  %s4 = ssub.s32 1, %s2
  %s5 = scalar_select 0, %s4, %s2
  $region1: #{tpu_custom_call.1} parent=0
    #allocation3 [shape = 'u8[8192]{0}', space=vmem, size = 0x2000, scoped, tag = 'input window, operand 0, single buffered']
    #allocation4 [shape = 's32[1]{0}', space=sflag, size = 0x4, scoped, tag = 'scoped memory for tpu_custom_call.1']
    #allocation5 [shape = 's32[1]{0}', space=sflag, size = 0x4, scoped, tag = 'scoped memory for tpu_custom_call.1']
    #allocation6 [shape = 'u8[512]{0}', space=vmem, size = 0x400, scoped, tag = 'output window, operand 0, single buffered']
    %6 = vsyncpa [#allocation4], 0
    %7 = vsyncpa [#allocation5], 0
    // Predicated region
    $region2: #{tpu_custom_call.1} parent=1 // pred_check
      _
    $region3: #{tpu_custom_call.1} parent=1 // pred_check_branch
      %9 = sbr.rel (0) target = $region5
    $region4: #{tpu_custom_call.1} parent=1 // pred_region
      %11 = vsyncadd [#allocation4], 0
      %s12 = sshll.u32 %s0, 4
      %s13 = int_to_ptr.hbm [resolvable:$true] %s12
      %s14 = sshll.u32 [#allocation3], 4
      %s15 = int_to_ptr.vmem [resolvable:$true] %s14
      %20 = dma.hbm_to_vmem [thread:$0]  %s13, 256, %s15, [#allocation4], 128, 128, 8
    $region5: #{tpu_custom_call.1} parent=1 // pred_fallthru
      _
    // Predicated region
    $region6: #{tpu_custom_call.1} parent=1 // pred_check
      _
    $region7: #{tpu_custom_call.1} parent=1 // pred_check_branch
      %22 = sbr.rel (0) target = $region9
    $region8: #{tpu_custom_call.1} parent=1 // pred_region
      %24 = dma.done [#allocation4], 256
    $region9: #{tpu_custom_call.1} parent=1 // pred_fallthru
      _
    %v25 = vld [vmem:[#allocation3] sm:$0xff]
    %v26 = vld [vmem:[#allocation3 + $0x8] sm:$0xff]
    %v27 = vmul.f32 %v25, 70.71068
    %v28 = vmul.f32 %v26, 70.71068
    %v29 = vsub.f32 %v27, -70.71068
    %v30 = vsub.f32 %v28, -70.71068
    %v31 = vmul.f32 %v29, %v29
    %v32 = vmul.f32 %v30, %v30
    %v33 = vsub.f32 0.0, %v31
    %v34 = vsub.f32 0.0, %v32
    %v35 = vmul.f32 %v33, 1.442695
    %v36 = vpow.pop %v35
    %v37 = vmul.f32 %v34, 1.442695
    %v38 = vpow.pop %v37
    %v39 = vadd.f32 %v36, %v38
    %v40 = vrot.slane %v39, 4
    %v41 = vadd.f32 %v39, %v40
    %v42 = vrot.slane %v41, 2
    %v43 = vadd.f32 %v41, %v42
    %v44 = vrot.slane %v43, 1
    %v45 = vadd.f32 %v43, %v44
    %46 = vst [vmem:[#allocation2] sm:$0x1] %v45
    %v47 = vsub.f32 %v27, -66.1487
    %v48 = vsub.f32 %v28, -66.1487
    %v49 = vmul.f32 %v47, %v47
    %v50 = vmul.f32 %v48, %v48
    %v51 = vsub.f32 0.0, %v49
    %v52 = vsub.f32 0.0, %v50
    %v53 = vmul.f32 %v51, 1.442695
    %v54 = vpow.pop %v53
    %v55 = vmul.f32 %v52, 1.442695
    %v56 = vpow.pop %v55
    %v57 = vadd.f32 %v54, %v56
    %v58 = vrot.slane %v57, 4
    %v59 = vadd.f32 %v57, %v58
    %v60 = vrot.slane %v59, 2
    %v61 = vadd.f32 %v59, %v60
    %v62 = vrot.slane %v61, 1
    %v63 = vadd.f32 %v61, %v62
    %64 = vst [vmem:[#allocation2 + $0x1] sm:$0x1] %v63
    %v65 = vsub.f32 %v27, -61.58672
    %v66 = vsub.f32 %v28, -61.58672
    %v67 = vmul.f32 %v65, %v65
    %v68 = vmul.f32 %v66, %v66
    %v69 = vsub.f32 0.0, %v67
    %v70 = vsub.f32 0.0, %v68
    %v71 = vmul.f32 %v69, 1.442695
    %v72 = vpow.pop %v71
    %v73 = vmul.f32 %v70, 1.442695
    %v74 = vpow.pop %v73
    %v75 = vadd.f32 %v72, %v74
    %v76 = vrot.slane %v75, 4
    %v77 = vadd.f32 %v75, %v76
    %v78 = vrot.slane %v77, 2
    %v79 = vadd.f32 %v77, %v78
    %v80 = vrot.slane %v79, 1
    %v81 = vadd.f32 %v79, %v80
    %82 = vst [vmem:[#allocation2 + $0x2] sm:$0x1] %v81
    %v83 = vsub.f32 %v27, -57.024742
    %v84 = vsub.f32 %v28, -57.024742
    %v85 = vmul.f32 %v83, %v83
    %v86 = vmul.f32 %v84, %v84
    %v87 = vsub.f32 0.0, %v85
    %v88 = vsub.f32 0.0, %v86
    %v89 = vmul.f32 %v87, 1.442695
    %v90 = vpow.pop %v89
    %v91 = vmul.f32 %v88, 1.442695
    %v92 = vpow.pop %v91
    %v93 = vadd.f32 %v90, %v92
    %v94 = vrot.slane %v93, 4
    %v95 = vadd.f32 %v93, %v94
    %v96 = vrot.slane %v95, 2
    %v97 = vadd.f32 %v95, %v96
    %v98 = vrot.slane %v97, 1
    %v99 = vadd.f32 %v97, %v98
    %100 = vst [vmem:[#allocation2 + $0x3] sm:$0x1] %v99
    %v101 = vsub.f32 %v27, -52.46276
    %v102 = vsub.f32 %v28, -52.46276
    %v103 = vmul.f32 %v101, %v101
    %v104 = vmul.f32 %v102, %v102
    %v105 = vsub.f32 0.0, %v103
    %v106 = vsub.f32 0.0, %v104
    %v107 = vmul.f32 %v105, 1.442695
    %v108 = vpow.pop %v107
    %v109 = vmul.f32 %v106, 1.442695
    %v110 = vpow.pop %v109
    %v111 = vadd.f32 %v108, %v110
    %v112 = vrot.slane %v111, 4
    %v113 = vadd.f32 %v111, %v112
    %v114 = vrot.slane %v113, 2
    %v115 = vadd.f32 %v113, %v114
    %v116 = vrot.slane %v115, 1
    %v117 = vadd.f32 %v115, %v116
    %118 = vst [vmem:[#allocation2 + $0x4] sm:$0x1] %v117
    %v119 = vsub.f32 %v27, -47.900784
    %v120 = vsub.f32 %v28, -47.900784
    %v121 = vmul.f32 %v119, %v119
    %v122 = vmul.f32 %v120, %v120
    %v123 = vsub.f32 0.0, %v121
    %v124 = vsub.f32 0.0, %v122
    %v125 = vmul.f32 %v123, 1.442695
    %v126 = vpow.pop %v125
    %v127 = vmul.f32 %v124, 1.442695
    %v128 = vpow.pop %v127
    %v129 = vadd.f32 %v126, %v128
    %v130 = vrot.slane %v129, 4
    %v131 = vadd.f32 %v129, %v130
    %v132 = vrot.slane %v131, 2
    %v133 = vadd.f32 %v131, %v132
    %v134 = vrot.slane %v133, 1
    %v135 = vadd.f32 %v133, %v134
    %136 = vst [vmem:[#allocation2 + $0x5] sm:$0x1] %v135
    %v137 = vsub.f32 %v27, -43.338802
    %v138 = vsub.f32 %v28, -43.338802
    %v139 = vmul.f32 %v137, %v137
    %v140 = vmul.f32 %v138, %v138
    %v141 = vsub.f32 0.0, %v139
    %v142 = vsub.f32 0.0, %v140
    %v143 = vmul.f32 %v141, 1.442695
    %v144 = vpow.pop %v143
    %v145 = vmul.f32 %v142, 1.442695
    %v146 = vpow.pop %v145
    %v147 = vadd.f32 %v144, %v146
    %v148 = vrot.slane %v147, 4
    %v149 = vadd.f32 %v147, %v148
    %v150 = vrot.slane %v149, 2
    %v151 = vadd.f32 %v149, %v150
    %v152 = vrot.slane %v151, 1
    %v153 = vadd.f32 %v151, %v152
    %154 = vst [vmem:[#allocation2 + $0x6] sm:$0x1] %v153
    %v155 = vsub.f32 %v27, -38.776825
    %v156 = vsub.f32 %v28, -38.776825
    %v157 = vmul.f32 %v155, %v155
    %v158 = vmul.f32 %v156, %v156
    %v159 = vsub.f32 0.0, %v157
    %v160 = vsub.f32 0.0, %v158
    %v161 = vmul.f32 %v159, 1.442695
    %v162 = vpow.pop %v161
    %v163 = vmul.f32 %v160, 1.442695
    %v164 = vpow.pop %v163
    %v165 = vadd.f32 %v162, %v164
    %v166 = vrot.slane %v165, 4
    %v167 = vadd.f32 %v165, %v166
    %v168 = vrot.slane %v167, 2
    %v169 = vadd.f32 %v167, %v168
    %v170 = vrot.slane %v169, 1
    %v171 = vadd.f32 %v169, %v170
    %172 = vst [vmem:[#allocation2 + $0x7] sm:$0x1] %v171
    %v173 = vsub.f32 %v27, -34.214844
    %v174 = vsub.f32 %v28, -34.214844
    %v175 = vmul.f32 %v173, %v173
    %v176 = vmul.f32 %v174, %v174
    %v177 = vsub.f32 0.0, %v175
    %v178 = vsub.f32 0.0, %v176
    %v179 = vmul.f32 %v177, 1.442695
    %v180 = vpow.pop %v179
    %v181 = vmul.f32 %v178, 1.442695
    %v182 = vpow.pop %v181
    %v183 = vadd.f32 %v180, %v182
    %v184 = vrot.slane %v183, 4
    %v185 = vadd.f32 %v183, %v184
    %v186 = vrot.slane %v185, 2
    %v187 = vadd.f32 %v185, %v186
    %v188 = vrot.slane %v187, 1
    %v189 = vadd.f32 %v187, %v188
    %190 = vst [vmem:[#allocation2 + $0x8] sm:$0x1] %v189
    %v191 = vsub.f32 %v27, -29.652864
    %v192 = vsub.f32 %v28, -29.652864
    %v193 = vmul.f32 %v191, %v191
    %v194 = vmul.f32 %v192, %v192
    %v195 = vsub.f32 0.0, %v193
    %v196 = vsub.f32 0.0, %v194
    %v197 = vmul.f32 %v195, 1.442695
    %v198 = vpow.pop %v197
    %v199 = vmul.f32 %v196, 1.442695
    %v200 = vpow.pop %v199
    %v201 = vadd.f32 %v198, %v200
    %v202 = vrot.slane %v201, 4
    %v203 = vadd.f32 %v201, %v202
    %v204 = vrot.slane %v203, 2
    %v205 = vadd.f32 %v203, %v204
    %v206 = vrot.slane %v205, 1
    %v207 = vadd.f32 %v205, %v206
    %208 = vst [vmem:[#allocation2 + $0x9] sm:$0x1] %v207
    %v209 = vsub.f32 %v27, -25.090885
    %v210 = vsub.f32 %v28, -25.090885
    %v211 = vmul.f32 %v209, %v209
    %v212 = vmul.f32 %v210, %v210
    %v213 = vsub.f32 0.0, %v211
    %v214 = vsub.f32 0.0, %v212
    %v215 = vmul.f32 %v213, 1.442695
    %v216 = vpow.pop %v215
    %v217 = vmul.f32 %v214, 1.442695
    %v218 = vpow.pop %v217
    %v219 = vadd.f32 %v216, %v218
    %v220 = vrot.slane %v219, 4
    %v221 = vadd.f32 %v219, %v220
    %v222 = vrot.slane %v221, 2
    %v223 = vadd.f32 %v221, %v222
    %v224 = vrot.slane %v223, 1
    %v225 = vadd.f32 %v223, %v224
    %226 = vst [vmem:[#allocation2 + $0xa] sm:$0x1] %v225
    %v227 = vsub.f32 %v27, -20.528906
    %v228 = vsub.f32 %v28, -20.528906
    %v229 = vmul.f32 %v227, %v227
    %v230 = vmul.f32 %v228, %v228
    %v231 = vsub.f32 0.0, %v229
    %v232 = vsub.f32 0.0, %v230
    %v233 = vmul.f32 %v231, 1.442695
    %v234 = vpow.pop %v233
    %v235 = vmul.f32 %v232, 1.442695
    %v236 = vpow.pop %v235
    %v237 = vadd.f32 %v234, %v236
    %v238 = vrot.slane %v237, 4
    %v239 = vadd.f32 %v237, %v238
    %v240 = vrot.slane %v239, 2
    %v241 = vadd.f32 %v239, %v240
    %v242 = vrot.slane %v241, 1
    %v243 = vadd.f32 %v241, %v242
    %244 = vst [vmem:[#allocation2 + $0xb] sm:$0x1] %v243
    %v245 = vsub.f32 %v27, -15.966928
    %v246 = vsub.f32 %v28, -15.966928
    %v247 = vmul.f32 %v245, %v245
    %v248 = vmul.f32 %v246, %v246
    %v249 = vsub.f32 0.0, %v247
    %v250 = vsub.f32 0.0, %v248
    %v251 = vmul.f32 %v249, 1.442695
    %v252 = vpow.pop %v251
    %v253 = vmul.f32 %v250, 1.442695
    %v254 = vpow.pop %v253
    %v255 = vadd.f32 %v252, %v254
    %v256 = vrot.slane %v255, 4
    %v257 = vadd.f32 %v255, %v256
    %v258 = vrot.slane %v257, 2
    %v259 = vadd.f32 %v257, %v258
    %v260 = vrot.slane %v259, 1
    %v261 = vadd.f32 %v259, %v260
    %262 = vst [vmem:[#allocation2 + $0xc] sm:$0x1] %v261
    %v263 = vsub.f32 %v27, -11.404948
    %v264 = vsub.f32 %v28, -11.404948
    %v265 = vmul.f32 %v263, %v263
    %v266 = vmul.f32 %v264, %v264
    %v267 = vsub.f32 0.0, %v265
    %v268 = vsub.f32 0.0, %v266
    %v269 = vmul.f32 %v267, 1.442695
    %v270 = vpow.pop %v269
    %v271 = vmul.f32 %v268, 1.442695
    %v272 = vpow.pop %v271
    %v273 = vadd.f32 %v270, %v272
    %v274 = vrot.slane %v273, 4
    %v275 = vadd.f32 %v273, %v274
    %v276 = vrot.slane %v275, 2
    %v277 = vadd.f32 %v275, %v276
    %v278 = vrot.slane %v277, 1
    %v279 = vadd.f32 %v277, %v278
    %280 = vst [vmem:[#allocation2 + $0xd] sm:$0x1] %v279
    %v281 = vsub.f32 %v27, -6.842969
    %v282 = vsub.f32 %v28, -6.842969
    %v283 = vmul.f32 %v281, %v281
    %v284 = vmul.f32 %v282, %v282
    %v285 = vsub.f32 0.0, %v283
    %v286 = vsub.f32 0.0, %v284
    %v287 = vmul.f32 %v285, 1.442695
    %v288 = vpow.pop %v287
    %v289 = vmul.f32 %v286, 1.442695
    %v290 = vpow.pop %v289
    %v291 = vadd.f32 %v288, %v290
    %v292 = vrot.slane %v291, 4
    %v293 = vadd.f32 %v291, %v292
    %v294 = vrot.slane %v293, 2
    %v295 = vadd.f32 %v293, %v294
    %v296 = vrot.slane %v295, 1
    %v297 = vadd.f32 %v295, %v296
    %298 = vst [vmem:[#allocation2 + $0xe] sm:$0x1] %v297
    %v299 = vsub.f32 %v27, -2.2809896
    %v300 = vsub.f32 %v28, -2.2809896
    %v301 = vmul.f32 %v299, %v299
    %v302 = vmul.f32 %v300, %v300
    %v303 = vsub.f32 0.0, %v301
    %v304 = vsub.f32 0.0, %v302
    %v305 = vmul.f32 %v303, 1.442695
    %v306 = vpow.pop %v305
    %v307 = vmul.f32 %v304, 1.442695
    %v308 = vpow.pop %v307
    %v309 = vadd.f32 %v306, %v308
    %v310 = vrot.slane %v309, 4
    %v311 = vadd.f32 %v309, %v310
    %v312 = vrot.slane %v311, 2
    %v313 = vadd.f32 %v311, %v312
    %v314 = vrot.slane %v313, 1
    %v315 = vadd.f32 %v313, %v314
    %316 = vst [vmem:[#allocation2 + $0xf] sm:$0x1] %v315
    %v317 = vsub.f32 %v27, 2.2809896
    %v318 = vsub.f32 %v28, 2.2809896
    %v319 = vmul.f32 %v317, %v317
    %v320 = vmul.f32 %v318, %v318
    %v321 = vsub.f32 0.0, %v319
    %v322 = vsub.f32 0.0, %v320
    %v323 = vmul.f32 %v321, 1.442695
    %v324 = vpow.pop %v323
    %v325 = vmul.f32 %v322, 1.442695
    %v326 = vpow.pop %v325
    %v327 = vadd.f32 %v324, %v326
    %v328 = vrot.slane %v327, 4
    %v329 = vadd.f32 %v327, %v328
    %v330 = vrot.slane %v329, 2
    %v331 = vadd.f32 %v329, %v330
    %v332 = vrot.slane %v331, 1
    %v333 = vadd.f32 %v331, %v332
    %334 = vst [vmem:[#allocation2 + $0x10] sm:$0x1] %v333
    %v335 = vsub.f32 %v27, 6.842969
    %v336 = vsub.f32 %v28, 6.842969
    %v337 = vmul.f32 %v335, %v335
    %v338 = vmul.f32 %v336, %v336
    %v339 = vsub.f32 0.0, %v337
    %v340 = vsub.f32 0.0, %v338
    %v341 = vmul.f32 %v339, 1.442695
    %v342 = vpow.pop %v341
    %v343 = vmul.f32 %v340, 1.442695
    %v344 = vpow.pop %v343
    %v345 = vadd.f32 %v342, %v344
    %v346 = vrot.slane %v345, 4
    %v347 = vadd.f32 %v345, %v346
    %v348 = vrot.slane %v347, 2
    %v349 = vadd.f32 %v347, %v348
    %v350 = vrot.slane %v349, 1
    %v351 = vadd.f32 %v349, %v350
    %352 = vst [vmem:[#allocation2 + $0x11] sm:$0x1] %v351
    %v353 = vsub.f32 %v27, 11.404948
    %v354 = vsub.f32 %v28, 11.404948
    %v355 = vmul.f32 %v353, %v353
    %v356 = vmul.f32 %v354, %v354
    %v357 = vsub.f32 0.0, %v355
    %v358 = vsub.f32 0.0, %v356
    %v359 = vmul.f32 %v357, 1.442695
    %v360 = vpow.pop %v359
    %v361 = vmul.f32 %v358, 1.442695
    %v362 = vpow.pop %v361
    %v363 = vadd.f32 %v360, %v362
    %v364 = vrot.slane %v363, 4
    %v365 = vadd.f32 %v363, %v364
    %v366 = vrot.slane %v365, 2
    %v367 = vadd.f32 %v365, %v366
    %v368 = vrot.slane %v367, 1
    %v369 = vadd.f32 %v367, %v368
    %370 = vst [vmem:[#allocation2 + $0x12] sm:$0x1] %v369
    %v371 = vsub.f32 %v27, 15.966928
    %v372 = vsub.f32 %v28, 15.966928
    %v373 = vmul.f32 %v371, %v371
    %v374 = vmul.f32 %v372, %v372
    %v375 = vsub.f32 0.0, %v373
    %v376 = vsub.f32 0.0, %v374
    %v377 = vmul.f32 %v375, 1.442695
    %v378 = vpow.pop %v377
    %v379 = vmul.f32 %v376, 1.442695
    %v380 = vpow.pop %v379
    %v381 = vadd.f32 %v378, %v380
    %v382 = vrot.slane %v381, 4
    %v383 = vadd.f32 %v381, %v382
    %v384 = vrot.slane %v383, 2
    %v385 = vadd.f32 %v383, %v384
    %v386 = vrot.slane %v385, 1
    %v387 = vadd.f32 %v385, %v386
    %388 = vst [vmem:[#allocation2 + $0x13] sm:$0x1] %v387
    %v389 = vsub.f32 %v27, 20.528906
    %v390 = vsub.f32 %v28, 20.528906
    %v391 = vmul.f32 %v389, %v389
    %v392 = vmul.f32 %v390, %v390
    %v393 = vsub.f32 0.0, %v391
    %v394 = vsub.f32 0.0, %v392
    %v395 = vmul.f32 %v393, 1.442695
    %v396 = vpow.pop %v395
    %v397 = vmul.f32 %v394, 1.442695
    %v398 = vpow.pop %v397
    %v399 = vadd.f32 %v396, %v398
    %v400 = vrot.slane %v399, 4
    %v401 = vadd.f32 %v399, %v400
    %v402 = vrot.slane %v401, 2
    %v403 = vadd.f32 %v401, %v402
    %v404 = vrot.slane %v403, 1
    %v405 = vadd.f32 %v403, %v404
    %406 = vst [vmem:[#allocation2 + $0x14] sm:$0x1] %v405
    %v407 = vsub.f32 %v27, 25.090885
    %v408 = vsub.f32 %v28, 25.090885
    %v409 = vmul.f32 %v407, %v407
    %v410 = vmul.f32 %v408, %v408
    %v411 = vsub.f32 0.0, %v409
    %v412 = vsub.f32 0.0, %v410
    %v413 = vmul.f32 %v411, 1.442695
    %v414 = vpow.pop %v413
    %v415 = vmul.f32 %v412, 1.442695
    %v416 = vpow.pop %v415
    %v417 = vadd.f32 %v414, %v416
    %v418 = vrot.slane %v417, 4
    %v419 = vadd.f32 %v417, %v418
    %v420 = vrot.slane %v419, 2
    %v421 = vadd.f32 %v419, %v420
    %v422 = vrot.slane %v421, 1
    %v423 = vadd.f32 %v421, %v422
    %424 = vst [vmem:[#allocation2 + $0x15] sm:$0x1] %v423
    %v425 = vsub.f32 %v27, 29.652864
    %v426 = vsub.f32 %v28, 29.652864
    %v427 = vmul.f32 %v425, %v425
    %v428 = vmul.f32 %v426, %v426
    %v429 = vsub.f32 0.0, %v427
    %v430 = vsub.f32 0.0, %v428
    %v431 = vmul.f32 %v429, 1.442695
    %v432 = vpow.pop %v431
    %v433 = vmul.f32 %v430, 1.442695
    %v434 = vpow.pop %v433
    %v435 = vadd.f32 %v432, %v434
    %v436 = vrot.slane %v435, 4
    %v437 = vadd.f32 %v435, %v436
    %v438 = vrot.slane %v437, 2
    %v439 = vadd.f32 %v437, %v438
    %v440 = vrot.slane %v439, 1
    %v441 = vadd.f32 %v439, %v440
    %442 = vst [vmem:[#allocation2 + $0x16] sm:$0x1] %v441
    %v443 = vsub.f32 %v27, 34.214844
    %v444 = vsub.f32 %v28, 34.214844
    %v445 = vmul.f32 %v443, %v443
    %v446 = vmul.f32 %v444, %v444
    %v447 = vsub.f32 0.0, %v445
    %v448 = vsub.f32 0.0, %v446
    %v449 = vmul.f32 %v447, 1.442695
    %v450 = vpow.pop %v449
    %v451 = vmul.f32 %v448, 1.442695
    %v452 = vpow.pop %v451
    %v453 = vadd.f32 %v450, %v452
    %v454 = vrot.slane %v453, 4
    %v455 = vadd.f32 %v453, %v454
    %v456 = vrot.slane %v455, 2
    %v457 = vadd.f32 %v455, %v456
    %v458 = vrot.slane %v457, 1
    %v459 = vadd.f32 %v457, %v458
    %460 = vst [vmem:[#allocation2 + $0x17] sm:$0x1] %v459
    %v461 = vsub.f32 %v27, 38.776825
    %v462 = vsub.f32 %v28, 38.776825
    %v463 = vmul.f32 %v461, %v461
    %v464 = vmul.f32 %v462, %v462
    %v465 = vsub.f32 0.0, %v463
    %v466 = vsub.f32 0.0, %v464
    %v467 = vmul.f32 %v465, 1.442695
    %v468 = vpow.pop %v467
    %v469 = vmul.f32 %v466, 1.442695
    %v470 = vpow.pop %v469
    %v471 = vadd.f32 %v468, %v470
    %v472 = vrot.slane %v471, 4
    %v473 = vadd.f32 %v471, %v472
    %v474 = vrot.slane %v473, 2
    %v475 = vadd.f32 %v473, %v474
    %v476 = vrot.slane %v475, 1
    %v477 = vadd.f32 %v475, %v476
    %478 = vst [vmem:[#allocation2 + $0x18] sm:$0x1] %v477
    %v479 = vsub.f32 %v27, 43.338802
    %v480 = vsub.f32 %v28, 43.338802
    %v481 = vmul.f32 %v479, %v479
    %v482 = vmul.f32 %v480, %v480
    %v483 = vsub.f32 0.0, %v481
    %v484 = vsub.f32 0.0, %v482
    %v485 = vmul.f32 %v483, 1.442695
    %v486 = vpow.pop %v485
    %v487 = vmul.f32 %v484, 1.442695
    %v488 = vpow.pop %v487
    %v489 = vadd.f32 %v486, %v488
    %v490 = vrot.slane %v489, 4
    %v491 = vadd.f32 %v489, %v490
    %v492 = vrot.slane %v491, 2
    %v493 = vadd.f32 %v491, %v492
    %v494 = vrot.slane %v493, 1
    %v495 = vadd.f32 %v493, %v494
    %496 = vst [vmem:[#allocation2 + $0x19] sm:$0x1] %v495
    %v497 = vsub.f32 %v27, 47.900784
    %v498 = vsub.f32 %v28, 47.900784
    %v499 = vmul.f32 %v497, %v497
    %v500 = vmul.f32 %v498, %v498
    %v501 = vsub.f32 0.0, %v499
    %v502 = vsub.f32 0.0, %v500
    %v503 = vmul.f32 %v501, 1.442695
    %v504 = vpow.pop %v503
    %v505 = vmul.f32 %v502, 1.442695
    %v506 = vpow.pop %v505
    %v507 = vadd.f32 %v504, %v506
    %v508 = vrot.slane %v507, 4
    %v509 = vadd.f32 %v507, %v508
    %v510 = vrot.slane %v509, 2
    %v511 = vadd.f32 %v509, %v510
    %v512 = vrot.slane %v511, 1
    %v513 = vadd.f32 %v511, %v512
    %514 = vst [vmem:[#allocation2 + $0x1a] sm:$0x1] %v513
    %v515 = vsub.f32 %v27, 52.46276
    %v516 = vsub.f32 %v28, 52.46276
    %v517 = vmul.f32 %v515, %v515
    %v518 = vmul.f32 %v516, %v516
    %v519 = vsub.f32 0.0, %v517
    %v520 = vsub.f32 0.0, %v518
    %v521 = vmul.f32 %v519, 1.442695
    %v522 = vpow.pop %v521
    %v523 = vmul.f32 %v520, 1.442695
    %v524 = vpow.pop %v523
    %v525 = vadd.f32 %v522, %v524
    %v526 = vrot.slane %v525, 4
    %v527 = vadd.f32 %v525, %v526
    %v528 = vrot.slane %v527, 2
    %v529 = vadd.f32 %v527, %v528
    %v530 = vrot.slane %v529, 1
    %v531 = vadd.f32 %v529, %v530
    %532 = vst [vmem:[#allocation2 + $0x1b] sm:$0x1] %v531
    %v533 = vsub.f32 %v27, 57.024742
    %v534 = vsub.f32 %v28, 57.024742
    %v535 = vmul.f32 %v533, %v533
    %v536 = vmul.f32 %v534, %v534
    %v537 = vsub.f32 0.0, %v535
    %v538 = vsub.f32 0.0, %v536
    %v539 = vmul.f32 %v537, 1.442695
    %v540 = vpow.pop %v539
    %v541 = vmul.f32 %v538, 1.442695
    %v542 = vpow.pop %v541
    %v543 = vadd.f32 %v540, %v542
    %v544 = vrot.slane %v543, 4
    %v545 = vadd.f32 %v543, %v544
    %v546 = vrot.slane %v545, 2
    %v547 = vadd.f32 %v545, %v546
    %v548 = vrot.slane %v547, 1
    %v549 = vadd.f32 %v547, %v548
    %550 = vst [vmem:[#allocation2 + $0x1c] sm:$0x1] %v549
    %v551 = vsub.f32 %v27, 61.58672
    %v552 = vsub.f32 %v28, 61.58672
    %v553 = vmul.f32 %v551, %v551
    %v554 = vmul.f32 %v552, %v552
    %v555 = vsub.f32 0.0, %v553
    %v556 = vsub.f32 0.0, %v554
    %v557 = vmul.f32 %v555, 1.442695
    %v558 = vpow.pop %v557
    %v559 = vmul.f32 %v556, 1.442695
    %v560 = vpow.pop %v559
    %v561 = vadd.f32 %v558, %v560
    %v562 = vrot.slane %v561, 4
    %v563 = vadd.f32 %v561, %v562
    %v564 = vrot.slane %v563, 2
    %v565 = vadd.f32 %v563, %v564
    %v566 = vrot.slane %v565, 1
    %v567 = vadd.f32 %v565, %v566
    %568 = vst [vmem:[#allocation2 + $0x1d] sm:$0x1] %v567
    %v569 = vsub.f32 %v27, 66.1487
    %v570 = vsub.f32 %v28, 66.1487
    %v571 = vmul.f32 %v569, %v569
    %v572 = vmul.f32 %v570, %v570
    %v573 = vsub.f32 0.0, %v571
    %v574 = vsub.f32 0.0, %v572
    %v575 = vmul.f32 %v573, 1.442695
    %v576 = vpow.pop %v575
    %v577 = vmul.f32 %v574, 1.442695
    %v578 = vpow.pop %v577
    %v579 = vadd.f32 %v576, %v578
    %v580 = vrot.slane %v579, 4
    %v581 = vadd.f32 %v579, %v580
    %v582 = vrot.slane %v581, 2
    %v583 = vadd.f32 %v581, %v582
    %v584 = vrot.slane %v583, 1
    %v585 = vadd.f32 %v583, %v584
    %586 = vst [vmem:[#allocation2 + $0x1e] sm:$0x1] %v585
    %v587 = vsub.f32 %v27, 70.71068
    %v588 = vsub.f32 %v28, 70.71068
    %v589 = vmul.f32 %v587, %v587
    %v590 = vmul.f32 %v588, %v588
    %v591 = vsub.f32 0.0, %v589
    %v592 = vsub.f32 0.0, %v590
    %v593 = vmul.f32 %v591, 1.442695
    %v594 = vpow.pop %v593
    %v595 = vmul.f32 %v592, 1.442695
    %v596 = vpow.pop %v595
    %v597 = vadd.f32 %v594, %v596
    %v598 = vrot.slane %v597, 4
    %v599 = vadd.f32 %v597, %v598
    %v600 = vrot.slane %v599, 2
    %v601 = vadd.f32 %v599, %v600
    %v602 = vrot.slane %v601, 1
    %v603 = vadd.f32 %v601, %v602
    %604 = vst [vmem:[#allocation2 + $0x1f] sm:$0x1] %v603
    %v605 = vld [vmem:[#allocation2] sm:$0xff]
    %v606 = vld [vmem:[#allocation2 + $0x8] sm:$0xff]
    %v607 = vld [vmem:[#allocation2 + $0x10] sm:$0xff]
    %v608 = vld [vmem:[#allocation2 + $0x18] sm:$0xff]
    %v609 = vadd.f32 %v605, %v606
    %v610 = vadd.f32 %v609, %v607
    %v611 = vadd.f32 %v610, %v608
    %v612 = vrot.slane %v611, 4
    %v613 = vadd.f32 %v611, %v612
    %v614 = vrot.slane %v613, 2
    %v615 = vadd.f32 %v613, %v614
    %v616 = vrot.slane %v615, 1
    %v617 = vadd.f32 %v615, %v616
    %v618 = vadd.f32 %v617, 1e-30
    %v619 = vrcp.pop %v618
    %v620 = vmul.f32 %v618, %v619
    %v621 = vsub.f32 1.0, %v620
    %v622 = vmul.f32 %v619, %v621
    %v623 = vadd.f32 %v619, %v622
    %vm624 = vweird.f32 %v618
    %vm625 = vweird.f32 %v619
    %vm626 = vmor %vm624, %vm625
    %v627 = vsel %vm626, %v619, %v623
    %v628 = vand.u32 2147483647, %v618
    %vm629 = vcmp.eq.f32.partialorder %v628, 8.507059e+37
    %v630 = vand.u32 %v618, 2147483648
    %v631 = vor.u32 1.1754944e-38, %v630
    %v632 = vsel %vm629, %v631, %v627
    %v633 = vmul.f32 %v605, %v632
    %v634 = vmul.f32 %v606, %v632
    %v635 = vmul.f32 %v607, %v632
    %v636 = vmul.f32 %v608, %v632
    %v637 = vadd.f32 %v633, 1e-30
    %v638 = vadd.f32 %v634, 1e-30
    %v639 = vadd.f32 %v635, 1e-30
    %v640 = vadd.f32 %v636, 1e-30
    %v641 = vlog2.pop %v637
    %v642 = vmul.f32 %v641, 0.6931472
    %v643 = vlog2.pop %v638
    %v644 = vmul.f32 %v643, 0.6931472
    %v645 = vlog2.pop %v639
    %v646 = vmul.f32 %v645, 0.6931472
    %v647 = vlog2.pop %v640
    %v648 = vmul.f32 %v647, 0.6931472
    %v649 = vmul.f32 %v637, %v642
    %v650 = vmul.f32 %v638, %v644
    %v651 = vmul.f32 %v639, %v646
    %v652 = vmul.f32 %v640, %v648
    %v653 = vadd.f32 %v649, %v650
    %v654 = vadd.f32 %v653, %v651
    %v655 = vadd.f32 %v654, %v652
    %v656 = vrot.slane %v655, 4
    %v657 = vadd.f32 %v655, %v656
    %v658 = vrot.slane %v657, 2
    %v659 = vadd.f32 %v657, %v658
    %v660 = vrot.slane %v659, 1
    %v661 = vadd.f32 %v659, %v660
    %v662 = vsub.f32 0.0, %v661
    %663 = vst [vmem:[#allocation6] sm:$0x1] %v662
    // Predicated region
    $region10: #{tpu_custom_call.1} parent=1 // pred_check
      _
    $region11: #{tpu_custom_call.1} parent=1 // pred_check_branch
      %665 = sbr.rel (0) target = $region13
    $region12: #{tpu_custom_call.1} parent=1 // pred_region
      %667 = vsyncadd [#allocation5], 0
      %s669 = sshll.u32 [#allocation6], 4
      %s670 = int_to_ptr.vmem [resolvable:$true] %s669
      %s671 = sshll.u32 %s1, 4
      %s672 = int_to_ptr.hbm [resolvable:$true] %s671
      %674 = dma.vmem_to_hbm [thread:$0]  %s670, 16, %s672, [#allocation5]
    $region13: #{tpu_custom_call.1} parent=1 // pred_fallthru
      _
    // Predicated region
    $region14: #{tpu_custom_call.1} parent=1 // pred_check
      _
    $region15: #{tpu_custom_call.1} parent=1 // pred_check_branch
      %676 = sbr.rel (0) target = $region17
    $region16: #{tpu_custom_call.1} parent=1 // pred_region
      %678 = dma.done [#allocation5], 16
    $region17: #{tpu_custom_call.1} parent=1 // pred_fallthru
      _
    %679 = vsyncpa [#allocation4], 1
    %680 = vsyncpa [#allocation5], 1

</llo_original>
